<compile_context>
chip_gen: v7x
topology: tpu7x:2x2x1
jax: 0.10.0
libtpu: 0.0.40
codegen_flags: <defaults>
</compile_context>

<pallas_src>
import functools

import jax
import jax.numpy as jnp
from jax import lax
from jax.experimental import pallas as pl
from jax.experimental.pallas import tpu as pltpu


# ----------------------------------------------------------------------------
# LSTM cell math on pre-activations with gate column order {i, f, o, g}.
# ----------------------------------------------------------------------------
def _lstm_cell(pre, c_prev, H):
    sig = jax.nn.sigmoid(pre[:, 0:3 * H])     # one EUP dispatch for i, f, o
    g = jnp.tanh(pre[:, 3 * H:4 * H])         # one EUP dispatch for g
    i = sig[:, 0:H]
    f = sig[:, H:2 * H]
    o = sig[:, 2 * H:3 * H]
    c = f * c_prev + i * g
    h = o * jnp.tanh(c)
    return h, c


# ----------------------------------------------------------------------------
# Fused kernel: all LSTM layers + decoder in a single pallas_call.
#
# Ref layout (positional):
#   x_ref                                  (1, S*Bt, E)   time-major slab
#   for l in range(L): w_ih_t (In_l,4H), w_hh_t (H,4H), b (1,4H)   [i,f,o,g]
#   dec_w_t (2H, C), dec_b (1, C)
#   out_ref (Bt, C)
#   scratch: xg_sc (S*Bt, 4H) f32, acts: min(2, L-1) buffers of (S*Bt, H) f32
# ----------------------------------------------------------------------------
def _fused_net_kernel(num_layers, num_hiddens, use_bf16, *refs):
    H = num_hiddens
    mm_dtype = jnp.bfloat16 if use_bf16 else jnp.float32

    n_w = 3 * num_layers
    x_ref = refs[0]
    layer_refs = refs[1:1 + n_w]
    dec_w_ref = refs[1 + n_w]
    dec_b_ref = refs[2 + n_w]
    out_ref = refs[3 + n_w]
    scratch = refs[4 + n_w:]
    xg_sc = scratch[0]                     # (S*Bt, 4H)
    acts = list(scratch[1:])               # inter-layer activations (VMEM)

    Bt = out_ref.shape[0]
    SB = xg_sc.shape[0]
    S = SB // Bt
    unroll = True if S <= 32 else 8        # bound unroll: only 64 vregs

    last_h0 = None
    last_hT = None

    for l in range(num_layers):
        w_ih_ref = layer_refs[3 * l + 0]
        w_hh_ref = layer_refs[3 * l + 1]
        b_ref = layer_refs[3 * l + 2]
        is_last = (l == num_layers - 1)

        # Hoisted loop-invariant loads / casts.
        w_hh = w_hh_ref[...].astype(mm_dtype)          # (H, 4H)
        bias = b_ref[...]                              # (1, 4H) f32

        if l == 0:
            inp2d = x_ref[0]                           # (S*Bt, E)
        else:
            inp2d = acts[(l - 1) % 2][...]             # (S*Bt, H)

        # (1) Input projection for ALL timesteps as ONE MXU matmul (+ bias):
        #     independent of the recurrence, lands in VMEM.
        xg_sc[...] = (
            jnp.dot(inp2d.astype(mm_dtype), w_ih_ref[...].astype(mm_dtype),
                    preferred_element_type=jnp.float32)
            + bias
        )

        # Only non-last layers need the full sequence materialized.
        out_buf = None if is_last else acts[l % 2]

        # (2) Serial recurrence; h/c live in vregs as fori_loop carries.
        #     t == 0 peeled: h_prev == 0, so gates are just xg row block 0.
        pre0 = xg_sc[pl.ds(0, Bt), :]
        h0, c0 = _lstm_cell(pre0, jnp.zeros((Bt, H), jnp.float32), H)
        if not is_last:
            out_buf[pl.ds(0, Bt), :] = h0

        def step(t, carry, w_hh=w_hh, out_buf=out_buf, is_last=is_last):
            h_prev, c_prev = carry
            off = pl.multiple_of(t * Bt, Bt)           # Bt % 8 == 0 -> aligned
            pre = xg_sc[pl.ds(off, Bt), :] + jnp.dot(
                h_prev.astype(mm_dtype), w_hh,
                preferred_element_type=jnp.float32)
            h, c = _lstm_cell(pre, c_prev, H)
            if not is_last:
                out_buf[pl.ds(off, Bt), :] = h         # VMEM scratch, not HBM
            return (h, c)

        hT, _ = lax.fori_loop(1, S, step, (h0, c0), unroll=unroll)

        if is_last:
            last_h0, last_hT = h0, hT

    # Fused decoder: cat([states[0], states[-1]], 1) @ W^T + b as a
    # split-weight sum of two matmuls (no in-kernel concat/relayout).
    logits = (
        jnp.dot(last_h0.astype(mm_dtype), dec_w_ref[0:H, :].astype(mm_dtype),
                preferred_element_type=jnp.float32)
        + jnp.dot(last_hT.astype(mm_dtype), dec_w_ref[H:2 * H, :].astype(mm_dtype),
                  preferred_element_type=jnp.float32)
        + dec_b_ref[...]
    )
    out_ref[...] = logits.astype(out_ref.dtype)


# ----------------------------------------------------------------------------
# Wrapper: builds the fused pallas_call (batch grid axis marked "parallel").
# ----------------------------------------------------------------------------
def _fused_net_call(x_blocked, kparams, num_hiddens, num_layers, *,
                    batch_block, seq_len, use_bf16=False):
    nb, SB, E = x_blocked.shape
    Bt = batch_block
    S = seq_len
    assert SB == S * Bt and Bt % 8 == 0, (SB, S, Bt)
    H = num_hiddens
    C = kparams["dec_b"].shape[-1]

    in_specs = [pl.BlockSpec((1, SB, E), lambda b: (b, 0, 0))]
    args = [x_blocked]
    for l in range(num_layers):
        for name in (f"w_ih_t_{l}", f"w_hh_t_{l}", f"b_{l}"):
            w = kparams[name]
            in_specs.append(pl.BlockSpec(w.shape, lambda b: (0, 0)))
            args.append(w)
    in_specs += [
        pl.BlockSpec(kparams["dec_w_t"].shape, lambda b: (0, 0)),
        pl.BlockSpec(kparams["dec_b"].shape, lambda b: (0, 0)),
    ]
    args += [kparams["dec_w_t"], kparams["dec_b"]]

    num_act = min(2, num_layers - 1)     # last layer never writes a full buffer
    scratch_shapes = [pltpu.VMEM((SB, 4 * H), jnp.float32)]
    scratch_shapes += [pltpu.VMEM((SB, H), jnp.float32) for _ in range(num_act)]

    kernel = functools.partial(_fused_net_kernel, num_layers, num_hiddens,
                               use_bf16)

    return pl.pallas_call(
        kernel,
        out_shape=jax.ShapeDtypeStruct((nb * Bt, C), jnp.float32),
        grid_spec=pltpu.PrefetchScalarGridSpec(
            num_scalar_prefetch=0,
            grid=(nb,),
            in_specs=in_specs,
            out_specs=pl.BlockSpec((Bt, C), lambda b: (b, 0)),
            scratch_shapes=scratch_shapes,
        ),
        compiler_params=pltpu.CompilerParams(
            dimension_semantics=("parallel",),        # batch shards -> v7x TCs
            vmem_limit_bytes=32 * 1024 * 1024,
        ),
    )(*args)


# ----------------------------------------------------------------------------
# Full Net forward (embedding gather + layout glue in JAX, one Pallas kernel).
# ----------------------------------------------------------------------------
@functools.partial(jax.jit, static_argnames=("num_hiddens", "num_layers",
                                             "use_bf16"))
def net_forward(x_tokens, kparams, *, num_hiddens, num_layers, use_bf16=False):
    B, S = x_tokens.shape
    E = kparams["embedding"].shape[-1]

    # Pad batch to a sublane multiple (>= 8); padded rows are sliced off.
    B_pad = max(8, -(-B // 8) * 8)
    if B_pad != B:
        x_tokens = jnp.pad(x_tokens, ((0, B_pad - B), (0, 0)))

    # Two batch blocks when big enough -> grid=(2,) shards across v7x's 2 TCs.
    if B_pad >= 16 and (B_pad // 2) % 8 == 0:
        Bt = B_pad // 2
    else:
        Bt = B_pad
    nb = B_pad // Bt

    # Gather directly time-major, then lay out per batch block so the kernel
    # sees a contiguous (S*Bt, E) slab (no in-kernel reshape needed).
    emb = jnp.take(kparams["embedding"], x_tokens.T, axis=0).astype(jnp.float32)
    x_blocked = (emb.reshape(S, nb, Bt, E)
                 .transpose(1, 0, 2, 3)
                 .reshape(nb, S * Bt, E))

    out = _fused_net_call(x_blocked, kparams, num_hiddens, num_layers,
                          batch_block=Bt, seq_len=S, use_bf16=use_bf16)
    return out[:B]


# ----------------------------------------------------------------------------
# Parameter init (PyTorch layout) + kernel-layout packing (gate repack i,f,o,g)
# ----------------------------------------------------------------------------
def init_raw_params(key, vocab_size, embedded_size, num_hiddens, num_layers,
                    num_classes):
    H = num_hiddens
    keys = jax.random.split(key, 3 + 4 * num_layers)
    k = iter(keys)
    scale = 0.1
    raw = {}
    raw["embedding"] = scale * jax.random.normal(
        next(k), (vocab_size, embedded_size), jnp.float32)
    for l in range(num_layers):
        in_size = embedded_size if l == 0 else H
        raw[f"w_ih_{l}"] = scale * jax.random.normal(next(k), (4 * H, in_size), jnp.float32)
        raw[f"w_hh_{l}"] = scale * jax.random.normal(next(k), (4 * H, H), jnp.float32)
        raw[f"b_ih_{l}"] = scale * jax.random.normal(next(k), (4 * H,), jnp.float32)
        raw[f"b_hh_{l}"] = scale * jax.random.normal(next(k), (4 * H,), jnp.float32)
    raw["dec_w"] = scale * jax.random.normal(next(k), (num_classes, 2 * H), jnp.float32)
    raw["dec_b"] = scale * jax.random.normal(next(k), (num_classes,), jnp.float32)
    return raw


def pack_kernel_params(raw, num_hiddens, num_layers):
    H = num_hiddens
    # PyTorch gate block order {i, f, g, o} -> kernel order {i, f, o, g} so
    # sigmoid covers one contiguous [0:3H) slice and tanh covers [3H:4H).
    perm = jnp.concatenate([
        jnp.arange(0, 2 * H),          # i, f
        jnp.arange(3 * H, 4 * H),      # o
        jnp.arange(2 * H, 3 * H),      # g
    ])
    kp = {"embedding": raw["embedding"]}
    for l in range(num_layers):
        kp[f"w_ih_t_{l}"] = raw[f"w_ih_{l}"][perm, :].T               # (In, 4H)
        kp[f"w_hh_t_{l}"] = raw[f"w_hh_{l}"][perm, :].T               # (H, 4H)
        kp[f"b_{l}"] = (raw[f"b_ih_{l}"] + raw[f"b_hh_{l}"])[perm].reshape(1, 4 * H)
    kp["dec_w_t"] = raw["dec_w"].T                                    # (2H, C)
    kp["dec_b"] = raw["dec_b"].reshape(1, -1)                         # (1, C)
    return kp


# ----------------------------------------------------------------------------
# Pure-JAX reference (PyTorch semantics, original gate order) for correctness.
# ----------------------------------------------------------------------------
def reference_forward(x_tokens, raw, num_hiddens, num_layers):
    H = num_hiddens
    emb = jnp.take(raw["embedding"], x_tokens, axis=0)
    states = jnp.transpose(emb, (1, 0, 2)).astype(jnp.float32)
    for l in range(num_layers):
        w_ih = raw[f"w_ih_{l}"]
        w_hh = raw[f"w_hh_{l}"]
        b = raw[f"b_ih_{l}"] + raw[f"b_hh_{l}"]
        B = states.shape[1]

        def step(carry, xt, w_ih=w_ih, w_hh=w_hh, b=b):
            h, c = carry
            gates = xt @ w_ih.T + h @ w_hh.T + b
            i = jax.nn.sigmoid(gates[:, 0 * H:1 * H])
            f = jax.nn.sigmoid(gates[:, 1 * H:2 * H])
            g = jnp.tanh(gates[:, 2 * H:3 * H])
            o = jax.nn.sigmoid(gates[:, 3 * H:4 * H])
            c = f * c + i * g
            h = o * jnp.tanh(c)
            return (h, c), h

        init = (jnp.zeros((B, H), jnp.float32), jnp.zeros((B, H), jnp.float32))
        _, states = jax.lax.scan(step, init, states)
    enc = jnp.concatenate([states[0], states[-1]], axis=1)
    return enc @ raw["dec_w"].T + raw["dec_b"]


if __name__ == "__main__":
    vocab_size = 50
    embedded_size = 32
    num_hiddens = 32
    num_layers = 2
    num_classes = 4
    batch = 2
    seq = 8

    key = jax.random.PRNGKey(0)
    k_params, k_x = jax.random.split(key)
    raw = init_raw_params(k_params, vocab_size, embedded_size,
                          num_hiddens, num_layers, num_classes)
    kparams = pack_kernel_params(raw, num_hiddens, num_layers)
    x = jax.random.randint(k_x, (batch, seq), 0, vocab_size, dtype=jnp.int32)

    ref = reference_forward(x, raw, num_hiddens, num_layers)

    # f32 path (matches PyTorch f32 semantics).
    out = net_forward(x, kparams, num_hiddens=num_hiddens, num_layers=num_layers)
    out = jax.block_until_ready(out)
    assert out.shape == (batch, num_classes), out.shape
    assert jnp.allclose(out, ref, atol=1e-4, rtol=1e-4), (out, ref)

    # bf16-operand matmul path (v6e/v7x MXU-native; f32 accum + f32 gate math).
    out_bf16 = net_forward(x, kparams, num_hiddens=num_hiddens,
                           num_layers=num_layers, use_bf16=True)
    out_bf16 = jax.block_until_ready(out_bf16)
    assert jnp.allclose(out_bf16, ref, atol=5e-2, rtol=5e-2), (out_bf16, ref)

    print("KERNEL_OK")
</pallas_src>

<mosaic_0001>
module attributes {stable_mosaic.version = 11 : i64} {
  func.func @_fused_net_kernel(%arg0: i32, %arg1: memref<1x64x32xf32, #tpu.memory_space<vmem>>, %arg2: memref<32x128xf32, #tpu.memory_space<vmem>>, %arg3: memref<32x128xf32, #tpu.memory_space<vmem>>, %arg4: memref<1x128xf32, #tpu.memory_space<vmem>>, %arg5: memref<32x128xf32, #tpu.memory_space<vmem>>, %arg6: memref<32x128xf32, #tpu.memory_space<vmem>>, %arg7: memref<1x128xf32, #tpu.memory_space<vmem>>, %arg8: memref<64x4xf32, #tpu.memory_space<vmem>>, %arg9: memref<1x4xf32, #tpu.memory_space<vmem>>, %arg10: memref<8x4xf32, #tpu.memory_space<vmem>>, %arg11: memref<64x128xf32, #tpu.memory_space<vmem>>, %arg12: memref<64x32xf32, #tpu.memory_space<vmem>>) attributes {dimension_semantics = [#tpu.dimension_semantics<parallel>], iteration_bounds = array<i64: 1>, scalar_prefetch = 0 : i64, scratch_operands = 2 : i64, tpu.core_type = #tpu.core_type<tc>, window_params = [{transform_indices = @transform_0, window_bounds = array<i64: 1, 64, 32>}, {pipeline_mode = #tpu.pipeline_mode<synchronous>, transform_indices = @transform_1, window_bounds = array<i64: 32, 128>}, {pipeline_mode = #tpu.pipeline_mode<synchronous>, transform_indices = @transform_2, window_bounds = array<i64: 32, 128>}, {pipeline_mode = #tpu.pipeline_mode<synchronous>, transform_indices = @transform_3, window_bounds = array<i64: 1, 128>}, {pipeline_mode = #tpu.pipeline_mode<synchronous>, transform_indices = @transform_4, window_bounds = array<i64: 32, 128>}, {pipeline_mode = #tpu.pipeline_mode<synchronous>, transform_indices = @transform_5, window_bounds = array<i64: 32, 128>}, {pipeline_mode = #tpu.pipeline_mode<synchronous>, transform_indices = @transform_6, window_bounds = array<i64: 1, 128>}, {pipeline_mode = #tpu.pipeline_mode<synchronous>, transform_indices = @transform_7, window_bounds = array<i64: 64, 4>}, {pipeline_mode = #tpu.pipeline_mode<synchronous>, transform_indices = @transform_8, window_bounds = array<i64: 1, 4>}, {transform_indices = @transform_9, window_bounds = array<i64: 8, 4>}]} {
    %c0 = arith.constant 0 : index
    %c0_0 = arith.constant 0 : index
    %0 = vector.load %arg3[%c0, %c0_0] : memref<32x128xf32, #tpu.memory_space<vmem>>, vector<32x128xf32>
    %c0_1 = arith.constant 0 : index
    %c0_2 = arith.constant 0 : index
    %1 = vector.load %arg4[%c0_1, %c0_2] : memref<1x128xf32, #tpu.memory_space<vmem>>, vector<1x128xf32>
    %c0_3 = arith.constant 0 : index
    %c0_4 = arith.constant 0 : index
    %c0_5 = arith.constant 0 : index
    %2 = vector.load %arg1[%c0_3, %c0_4, %c0_5] : memref<1x64x32xf32, #tpu.memory_space<vmem>>, vector<1x64x32xf32>
    %3 = vector.shape_cast %2 : vector<1x64x32xf32> to vector<64x32xf32>
    %c0_6 = arith.constant 0 : index
    %c0_7 = arith.constant 0 : index
    %4 = vector.load %arg2[%c0_6, %c0_7] : memref<32x128xf32, #tpu.memory_space<vmem>>, vector<32x128xf32>
    %cst = arith.constant dense<0.000000e+00> : vector<64x128xf32>
    %5 = tpu.matmul %3, %4, %cst {dimension_numbers = #tpu.dot_dimension_numbers<[1], [0], [0], [1], [0, 0, 1, 1], [], []>} : vector<64x32xf32>, vector<32x128xf32>, vector<64x128xf32> -> vector<64x128xf32>
    %6 = vector.broadcast %1 : vector<1x128xf32> to vector<64x128xf32>
    %7 = arith.addf %5, %6 : vector<64x128xf32>
    %c0_8 = arith.constant 0 : index
    %c0_9 = arith.constant 0 : index
    %8 = vector.load %arg11[%c0_8, %c0_9] : memref<64x128xf32, #tpu.memory_space<vmem>>, vector<64x128xf32>
    tpu.vector_store %arg11[%c0_8, %c0_9], %7 {strides = array<i32>} : memref<64x128xf32, #tpu.memory_space<vmem>>, vector<64x128xf32>,
    %c0_10 = arith.constant 0 : index
    %c0_11 = arith.constant 0 : index
    %9 = vector.load %arg11[%c0_10, %c0_11] : memref<64x128xf32, #tpu.memory_space<vmem>>, vector<8x128xf32>
    %cst_12 = arith.constant 0.000000e+00 : f32
    %10 = vector.broadcast %cst_12 : f32 to vector<8x32xf32>
    %11 = vector.extract_strided_slice %9 {offsets = [0, 0], sizes = [8, 96], strides = [1, 1]} : vector<8x128xf32> to vector<8x96xf32>
    %12 = arith.negf %11 : vector<8x96xf32>
    %13 = math.exp %12 : vector<8x96xf32>
    %cst_13 = arith.constant 1.000000e+00 : f32
    %14 = vector.broadcast %cst_13 : f32 to vector<8x96xf32>
    %15 = arith.addf %14, %13 : vector<8x96xf32>
    %16 = arith.divf %14, %15 : vector<8x96xf32>
    %17 = vector.extract_strided_slice %9 {offsets = [0, 96], sizes = [8, 32], strides = [1, 1]} : vector<8x128xf32> to vector<8x32xf32>
    %18 = math.tanh %17 : vector<8x32xf32>
    %19 = vector.extract_strided_slice %16 {offsets = [0, 0], sizes = [8, 32], strides = [1, 1]} : vector<8x96xf32> to vector<8x32xf32>
    %20 = vector.extract_strided_slice %16 {offsets = [0, 32], sizes = [8, 32], strides = [1, 1]} : vector<8x96xf32> to vector<8x32xf32>
    %21 = vector.extract_strided_slice %16 {offsets = [0, 64], sizes = [8, 32], strides = [1, 1]} : vector<8x96xf32> to vector<8x32xf32>
    %22 = arith.mulf %20, %10 : vector<8x32xf32>
    %23 = arith.mulf %19, %18 : vector<8x32xf32>
    %24 = arith.addf %22, %23 : vector<8x32xf32>
    %25 = math.tanh %24 : vector<8x32xf32>
    %26 = arith.mulf %21, %25 : vector<8x32xf32>
    %c0_14 = arith.constant 0 : index
    %c0_15 = arith.constant 0 : index
    %27 = vector.load %arg12[%c0_14, %c0_15] : memref<64x32xf32, #tpu.memory_space<vmem>>, vector<8x32xf32>
    tpu.vector_store %arg12[%c0_14, %c0_15], %26 {strides = array<i32>} : memref<64x32xf32, #tpu.memory_space<vmem>>, vector<8x32xf32>,
    %c1_i32 = arith.constant 1 : i32
    %c8_i32 = arith.constant 8 : i32
    %28 = arith.muli %c1_i32, %c8_i32 : i32
    %29 = tpu.assume_multiple %28, 8 : i32
    %30 = arith.index_cast %29 : i32 to index
    %c0_16 = arith.constant 0 : index
    %31 = vector.load %arg11[%30, %c0_16] : memref<64x128xf32, #tpu.memory_space<vmem>>, vector<8x128xf32>
    %cst_17 = arith.constant dense<0.000000e+00> : vector<8x128xf32>
    %32 = tpu.matmul %26, %0, %cst_17 {dimension_numbers = #tpu.dot_dimension_numbers<[1], [0], [0], [1], [0, 0, 1, 1], [], []>} : vector<8x32xf32>, vector<32x128xf32>, vector<8x128xf32> -> vector<8x128xf32>
    %33 = arith.addf %31, %32 : vector<8x128xf32>
    %34 = vector.extract_strided_slice %33 {offsets = [0, 0], sizes = [8, 96], strides = [1, 1]} : vector<8x128xf32> to vector<8x96xf32>
    %35 = arith.negf %34 : vector<8x96xf32>
    %36 = math.exp %35 : vector<8x96xf32>
    %cst_18 = arith.constant 1.000000e+00 : f32
    %37 = vector.broadcast %cst_18 : f32 to vector<8x96xf32>
    %38 = arith.addf %37, %36 : vector<8x96xf32>
    %39 = arith.divf %37, %38 : vector<8x96xf32>
    %40 = vector.extract_strided_slice %33 {offsets = [0, 96], sizes = [8, 32], strides = [1, 1]} : vector<8x128xf32> to vector<8x32xf32>
    %41 = math.tanh %40 : vector<8x32xf32>
    %42 = vector.extract_strided_slice %39 {offsets = [0, 0], sizes = [8, 32], strides = [1, 1]} : vector<8x96xf32> to vector<8x32xf32>
    %43 = vector.extract_strided_slice %39 {offsets = [0, 32], sizes = [8, 32], strides = [1, 1]} : vector<8x96xf32> to vector<8x32xf32>
    %44 = vector.extract_strided_slice %39 {offsets = [0, 64], sizes = [8, 32], strides = [1, 1]} : vector<8x96xf32> to vector<8x32xf32>
    %45 = arith.mulf %43, %24 : vector<8x32xf32>
    %46 = arith.mulf %42, %41 : vector<8x32xf32>
    %47 = arith.addf %45, %46 : vector<8x32xf32>
    %48 = math.tanh %47 : vector<8x32xf32>
    %49 = arith.mulf %44, %48 : vector<8x32xf32>
    %50 = arith.index_cast %29 : i32 to index
    %c0_19 = arith.constant 0 : index
    %51 = vector.load %arg12[%50, %c0_19] : memref<64x32xf32, #tpu.memory_space<vmem>>, vector<8x32xf32>
    tpu.vector_store %arg12[%50, %c0_19], %49 {strides = array<i32>} : memref<64x32xf32, #tpu.memory_space<vmem>>, vector<8x32xf32>,
    %c2_i32 = arith.constant 2 : i32
    %c8_i32_20 = arith.constant 8 : i32
    %52 = arith.muli %c2_i32, %c8_i32_20 : i32
    %53 = tpu.assume_multiple %52, 8 : i32
    %54 = arith.index_cast %53 : i32 to index
    %c0_21 = arith.constant 0 : index
    %55 = vector.load %arg11[%54, %c0_21] : memref<64x128xf32, #tpu.memory_space<vmem>>, vector<8x128xf32>
    %cst_22 = arith.constant dense<0.000000e+00> : vector<8x128xf32>
    %56 = tpu.matmul %49, %0, %cst_22 {dimension_numbers = #tpu.dot_dimension_numbers<[1], [0], [0], [1], [0, 0, 1, 1], [], []>} : vector<8x32xf32>, vector<32x128xf32>, vector<8x128xf32> -> vector<8x128xf32>
    %57 = arith.addf %55, %56 : vector<8x128xf32>
    %58 = vector.extract_strided_slice %57 {offsets = [0, 0], sizes = [8, 96], strides = [1, 1]} : vector<8x128xf32> to vector<8x96xf32>
    %59 = arith.negf %58 : vector<8x96xf32>
    %60 = math.exp %59 : vector<8x96xf32>
    %cst_23 = arith.constant 1.000000e+00 : f32
    %61 = vector.broadcast %cst_23 : f32 to vector<8x96xf32>
    %62 = arith.addf %61, %60 : vector<8x96xf32>
    %63 = arith.divf %61, %62 : vector<8x96xf32>
    %64 = vector.extract_strided_slice %57 {offsets = [0, 96], sizes = [8, 32], strides = [1, 1]} : vector<8x128xf32> to vector<8x32xf32>
    %65 = math.tanh %64 : vector<8x32xf32>
    %66 = vector.extract_strided_slice %63 {offsets = [0, 0], sizes = [8, 32], strides = [1, 1]} : vector<8x96xf32> to vector<8x32xf32>
    %67 = vector.extract_strided_slice %63 {offsets = [0, 32], sizes = [8, 32], strides = [1, 1]} : vector<8x96xf32> to vector<8x32xf32>
    %68 = vector.extract_strided_slice %63 {offsets = [0, 64], sizes = [8, 32], strides = [1, 1]} : vector<8x96xf32> to vector<8x32xf32>
    %69 = arith.mulf %67, %47 : vector<8x32xf32>
    %70 = arith.mulf %66, %65 : vector<8x32xf32>
    %71 = arith.addf %69, %70 : vector<8x32xf32>
    %72 = math.tanh %71 : vector<8x32xf32>
    %73 = arith.mulf %68, %72 : vector<8x32xf32>
    %74 = arith.index_cast %53 : i32 to index
    %c0_24 = arith.constant 0 : index
    %75 = vector.load %arg12[%74, %c0_24] : memref<64x32xf32, #tpu.memory_space<vmem>>, vector<8x32xf32>
    tpu.vector_store %arg12[%74, %c0_24], %73 {strides = array<i32>} : memref<64x32xf32, #tpu.memory_space<vmem>>, vector<8x32xf32>,
    %c3_i32 = arith.constant 3 : i32
    %c8_i32_25 = arith.constant 8 : i32
    %76 = arith.muli %c3_i32, %c8_i32_25 : i32
    %77 = tpu.assume_multiple %76, 8 : i32
    %78 = arith.index_cast %77 : i32 to index
    %c0_26 = arith.constant 0 : index
    %79 = vector.load %arg11[%78, %c0_26] : memref<64x128xf32, #tpu.memory_space<vmem>>, vector<8x128xf32>
    %cst_27 = arith.constant dense<0.000000e+00> : vector<8x128xf32>
    %80 = tpu.matmul %73, %0, %cst_27 {dimension_numbers = #tpu.dot_dimension_numbers<[1], [0], [0], [1], [0, 0, 1, 1], [], []>} : vector<8x32xf32>, vector<32x128xf32>, vector<8x128xf32> -> vector<8x128xf32>
    %81 = arith.addf %79, %80 : vector<8x128xf32>
    %82 = vector.extract_strided_slice %81 {offsets = [0, 0], sizes = [8, 96], strides = [1, 1]} : vector<8x128xf32> to vector<8x96xf32>
    %83 = arith.negf %82 : vector<8x96xf32>
    %84 = math.exp %83 : vector<8x96xf32>
    %cst_28 = arith.constant 1.000000e+00 : f32
    %85 = vector.broadcast %cst_28 : f32 to vector<8x96xf32>
    %86 = arith.addf %85, %84 : vector<8x96xf32>
    %87 = arith.divf %85, %86 : vector<8x96xf32>
    %88 = vector.extract_strided_slice %81 {offsets = [0, 96], sizes = [8, 32], strides = [1, 1]} : vector<8x128xf32> to vector<8x32xf32>
    %89 = math.tanh %88 : vector<8x32xf32>
    %90 = vector.extract_strided_slice %87 {offsets = [0, 0], sizes = [8, 32], strides = [1, 1]} : vector<8x96xf32> to vector<8x32xf32>
    %91 = vector.extract_strided_slice %87 {offsets = [0, 32], sizes = [8, 32], strides = [1, 1]} : vector<8x96xf32> to vector<8x32xf32>
    %92 = vector.extract_strided_slice %87 {offsets = [0, 64], sizes = [8, 32], strides = [1, 1]} : vector<8x96xf32> to vector<8x32xf32>
    %93 = arith.mulf %91, %71 : vector<8x32xf32>
    %94 = arith.mulf %90, %89 : vector<8x32xf32>
    %95 = arith.addf %93, %94 : vector<8x32xf32>
    %96 = math.tanh %95 : vector<8x32xf32>
    %97 = arith.mulf %92, %96 : vector<8x32xf32>
    %98 = arith.index_cast %77 : i32 to index
    %c0_29 = arith.constant 0 : index
    %99 = vector.load %arg12[%98, %c0_29] : memref<64x32xf32, #tpu.memory_space<vmem>>, vector<8x32xf32>
    tpu.vector_store %arg12[%98, %c0_29], %97 {strides = array<i32>} : memref<64x32xf32, #tpu.memory_space<vmem>>, vector<8x32xf32>,
    %c4_i32 = arith.constant 4 : i32
    %c8_i32_30 = arith.constant 8 : i32
    %100 = arith.muli %c4_i32, %c8_i32_30 : i32
    %101 = tpu.assume_multiple %100, 8 : i32
    %102 = arith.index_cast %101 : i32 to index
    %c0_31 = arith.constant 0 : index
    %103 = vector.load %arg11[%102, %c0_31] : memref<64x128xf32, #tpu.memory_space<vmem>>, vector<8x128xf32>
    %cst_32 = arith.constant dense<0.000000e+00> : vector<8x128xf32>
    %104 = tpu.matmul %97, %0, %cst_32 {dimension_numbers = #tpu.dot_dimension_numbers<[1], [0], [0], [1], [0, 0, 1, 1], [], []>} : vector<8x32xf32>, vector<32x128xf32>, vector<8x128xf32> -> vector<8x128xf32>
    %105 = arith.addf %103, %104 : vector<8x128xf32>
    %106 = vector.extract_strided_slice %105 {offsets = [0, 0], sizes = [8, 96], strides = [1, 1]} : vector<8x128xf32> to vector<8x96xf32>
    %107 = arith.negf %106 : vector<8x96xf32>
    %108 = math.exp %107 : vector<8x96xf32>
    %cst_33 = arith.constant 1.000000e+00 : f32
    %109 = vector.broadcast %cst_33 : f32 to vector<8x96xf32>
    %110 = arith.addf %109, %108 : vector<8x96xf32>
    %111 = arith.divf %109, %110 : vector<8x96xf32>
    %112 = vector.extract_strided_slice %105 {offsets = [0, 96], sizes = [8, 32], strides = [1, 1]} : vector<8x128xf32> to vector<8x32xf32>
    %113 = math.tanh %112 : vector<8x32xf32>
    %114 = vector.extract_strided_slice %111 {offsets = [0, 0], sizes = [8, 32], strides = [1, 1]} : vector<8x96xf32> to vector<8x32xf32>
    %115 = vector.extract_strided_slice %111 {offsets = [0, 32], sizes = [8, 32], strides = [1, 1]} : vector<8x96xf32> to vector<8x32xf32>
    %116 = vector.extract_strided_slice %111 {offsets = [0, 64], sizes = [8, 32], strides = [1, 1]} : vector<8x96xf32> to vector<8x32xf32>
    %117 = arith.mulf %115, %95 : vector<8x32xf32>
    %118 = arith.mulf %114, %113 : vector<8x32xf32>
    %119 = arith.addf %117, %118 : vector<8x32xf32>
    %120 = math.tanh %119 : vector<8x32xf32>
    %121 = arith.mulf %116, %120 : vector<8x32xf32>
    %122 = arith.index_cast %101 : i32 to index
    %c0_34 = arith.constant 0 : index
    %123 = vector.load %arg12[%122, %c0_34] : memref<64x32xf32, #tpu.memory_space<vmem>>, vector<8x32xf32>
    tpu.vector_store %arg12[%122, %c0_34], %121 {strides = array<i32>} : memref<64x32xf32, #tpu.memory_space<vmem>>, vector<8x32xf32>,
    %c5_i32 = arith.constant 5 : i32
    %c8_i32_35 = arith.constant 8 : i32
    %124 = arith.muli %c5_i32, %c8_i32_35 : i32
    %125 = tpu.assume_multiple %124, 8 : i32
    %126 = arith.index_cast %125 : i32 to index
    %c0_36 = arith.constant 0 : index
    %127 = vector.load %arg11[%126, %c0_36] : memref<64x128xf32, #tpu.memory_space<vmem>>, vector<8x128xf32>
    %cst_37 = arith.constant dense<0.000000e+00> : vector<8x128xf32>
    %128 = tpu.matmul %121, %0, %cst_37 {dimension_numbers = #tpu.dot_dimension_numbers<[1], [0], [0], [1], [0, 0, 1, 1], [], []>} : vector<8x32xf32>, vector<32x128xf32>, vector<8x128xf32> -> vector<8x128xf32>
    %129 = arith.addf %127, %128 : vector<8x128xf32>
    %130 = vector.extract_strided_slice %129 {offsets = [0, 0], sizes = [8, 96], strides = [1, 1]} : vector<8x128xf32> to vector<8x96xf32>
    %131 = arith.negf %130 : vector<8x96xf32>
    %132 = math.exp %131 : vector<8x96xf32>
    %cst_38 = arith.constant 1.000000e+00 : f32
    %133 = vector.broadcast %cst_38 : f32 to vector<8x96xf32>
    %134 = arith.addf %133, %132 : vector<8x96xf32>
    %135 = arith.divf %133, %134 : vector<8x96xf32>
    %136 = vector.extract_strided_slice %129 {offsets = [0, 96], sizes = [8, 32], strides = [1, 1]} : vector<8x128xf32> to vector<8x32xf32>
    %137 = math.tanh %136 : vector<8x32xf32>
    %138 = vector.extract_strided_slice %135 {offsets = [0, 0], sizes = [8, 32], strides = [1, 1]} : vector<8x96xf32> to vector<8x32xf32>
    %139 = vector.extract_strided_slice %135 {offsets = [0, 32], sizes = [8, 32], strides = [1, 1]} : vector<8x96xf32> to vector<8x32xf32>
    %140 = vector.extract_strided_slice %135 {offsets = [0, 64], sizes = [8, 32], strides = [1, 1]} : vector<8x96xf32> to vector<8x32xf32>
    %141 = arith.mulf %139, %119 : vector<8x32xf32>
    %142 = arith.mulf %138, %137 : vector<8x32xf32>
    %143 = arith.addf %141, %142 : vector<8x32xf32>
    %144 = math.tanh %143 : vector<8x32xf32>
    %145 = arith.mulf %140, %144 : vector<8x32xf32>
    %146 = arith.index_cast %125 : i32 to index
    %c0_39 = arith.constant 0 : index
    %147 = vector.load %arg12[%146, %c0_39] : memref<64x32xf32, #tpu.memory_space<vmem>>, vector<8x32xf32>
    tpu.vector_store %arg12[%146, %c0_39], %145 {strides = array<i32>} : memref<64x32xf32, #tpu.memory_space<vmem>>, vector<8x32xf32>,
    %c6_i32 = arith.constant 6 : i32
    %c8_i32_40 = arith.constant 8 : i32
    %148 = arith.muli %c6_i32, %c8_i32_40 : i32
    %149 = tpu.assume_multiple %148, 8 : i32
    %150 = arith.index_cast %149 : i32 to index
    %c0_41 = arith.constant 0 : index
    %151 = vector.load %arg11[%150, %c0_41] : memref<64x128xf32, #tpu.memory_space<vmem>>, vector<8x128xf32>
    %cst_42 = arith.constant dense<0.000000e+00> : vector<8x128xf32>
    %152 = tpu.matmul %145, %0, %cst_42 {dimension_numbers = #tpu.dot_dimension_numbers<[1], [0], [0], [1], [0, 0, 1, 1], [], []>} : vector<8x32xf32>, vector<32x128xf32>, vector<8x128xf32> -> vector<8x128xf32>
    %153 = arith.addf %151, %152 : vector<8x128xf32>
    %154 = vector.extract_strided_slice %153 {offsets = [0, 0], sizes = [8, 96], strides = [1, 1]} : vector<8x128xf32> to vector<8x96xf32>
    %155 = arith.negf %154 : vector<8x96xf32>
    %156 = math.exp %155 : vector<8x96xf32>
    %cst_43 = arith.constant 1.000000e+00 : f32
    %157 = vector.broadcast %cst_43 : f32 to vector<8x96xf32>
    %158 = arith.addf %157, %156 : vector<8x96xf32>
    %159 = arith.divf %157, %158 : vector<8x96xf32>
    %160 = vector.extract_strided_slice %153 {offsets = [0, 96], sizes = [8, 32], strides = [1, 1]} : vector<8x128xf32> to vector<8x32xf32>
    %161 = math.tanh %160 : vector<8x32xf32>
    %162 = vector.extract_strided_slice %159 {offsets = [0, 0], sizes = [8, 32], strides = [1, 1]} : vector<8x96xf32> to vector<8x32xf32>
    %163 = vector.extract_strided_slice %159 {offsets = [0, 32], sizes = [8, 32], strides = [1, 1]} : vector<8x96xf32> to vector<8x32xf32>
    %164 = vector.extract_strided_slice %159 {offsets = [0, 64], sizes = [8, 32], strides = [1, 1]} : vector<8x96xf32> to vector<8x32xf32>
    %165 = arith.mulf %163, %143 : vector<8x32xf32>
    %166 = arith.mulf %162, %161 : vector<8x32xf32>
    %167 = arith.addf %165, %166 : vector<8x32xf32>
    %168 = math.tanh %167 : vector<8x32xf32>
    %169 = arith.mulf %164, %168 : vector<8x32xf32>
    %170 = arith.index_cast %149 : i32 to index
    %c0_44 = arith.constant 0 : index
    %171 = vector.load %arg12[%170, %c0_44] : memref<64x32xf32, #tpu.memory_space<vmem>>, vector<8x32xf32>
    tpu.vector_store %arg12[%170, %c0_44], %169 {strides = array<i32>} : memref<64x32xf32, #tpu.memory_space<vmem>>, vector<8x32xf32>,
    %c7_i32 = arith.constant 7 : i32
    %c8_i32_45 = arith.constant 8 : i32
    %172 = arith.muli %c7_i32, %c8_i32_45 : i32
    %173 = tpu.assume_multiple %172, 8 : i32
    %174 = arith.index_cast %173 : i32 to index
    %c0_46 = arith.constant 0 : index
    %175 = vector.load %arg11[%174, %c0_46] : memref<64x128xf32, #tpu.memory_space<vmem>>, vector<8x128xf32>
    %cst_47 = arith.constant dense<0.000000e+00> : vector<8x128xf32>
    %176 = tpu.matmul %169, %0, %cst_47 {dimension_numbers = #tpu.dot_dimension_numbers<[1], [0], [0], [1], [0, 0, 1, 1], [], []>} : vector<8x32xf32>, vector<32x128xf32>, vector<8x128xf32> -> vector<8x128xf32>
    %177 = arith.addf %175, %176 : vector<8x128xf32>
    %178 = vector.extract_strided_slice %177 {offsets = [0, 0], sizes = [8, 96], strides = [1, 1]} : vector<8x128xf32> to vector<8x96xf32>
    %179 = arith.negf %178 : vector<8x96xf32>
    %180 = math.exp %179 : vector<8x96xf32>
    %cst_48 = arith.constant 1.000000e+00 : f32
    %181 = vector.broadcast %cst_48 : f32 to vector<8x96xf32>
    %182 = arith.addf %181, %180 : vector<8x96xf32>
    %183 = arith.divf %181, %182 : vector<8x96xf32>
    %184 = vector.extract_strided_slice %177 {offsets = [0, 96], sizes = [8, 32], strides = [1, 1]} : vector<8x128xf32> to vector<8x32xf32>
    %185 = math.tanh %184 : vector<8x32xf32>
    %186 = vector.extract_strided_slice %183 {offsets = [0, 0], sizes = [8, 32], strides = [1, 1]} : vector<8x96xf32> to vector<8x32xf32>
    %187 = vector.extract_strided_slice %183 {offsets = [0, 32], sizes = [8, 32], strides = [1, 1]} : vector<8x96xf32> to vector<8x32xf32>
    %188 = vector.extract_strided_slice %183 {offsets = [0, 64], sizes = [8, 32], strides = [1, 1]} : vector<8x96xf32> to vector<8x32xf32>
    %189 = arith.mulf %187, %167 : vector<8x32xf32>
    %190 = arith.mulf %186, %185 : vector<8x32xf32>
    %191 = arith.addf %189, %190 : vector<8x32xf32>
    %192 = math.tanh %191 : vector<8x32xf32>
    %193 = arith.mulf %188, %192 : vector<8x32xf32>
    %194 = arith.index_cast %173 : i32 to index
    %c0_49 = arith.constant 0 : index
    %195 = vector.load %arg12[%194, %c0_49] : memref<64x32xf32, #tpu.memory_space<vmem>>, vector<8x32xf32>
    tpu.vector_store %arg12[%194, %c0_49], %193 {strides = array<i32>} : memref<64x32xf32, #tpu.memory_space<vmem>>, vector<8x32xf32>,
    %c7_i32_50 = arith.constant 7 : i32
    %c0_51 = arith.constant 0 : index
    %c0_52 = arith.constant 0 : index
    %196 = vector.load %arg6[%c0_51, %c0_52] : memref<32x128xf32, #tpu.memory_space<vmem>>, vector<32x128xf32>
    %c0_53 = arith.constant 0 : index
    %c0_54 = arith.constant 0 : index
    %197 = vector.load %arg7[%c0_53, %c0_54] : memref<1x128xf32, #tpu.memory_space<vmem>>, vector<1x128xf32>
    %c0_55 = arith.constant 0 : index
    %c0_56 = arith.constant 0 : index
    %198 = vector.load %arg12[%c0_55, %c0_56] : memref<64x32xf32, #tpu.memory_space<vmem>>, vector<64x32xf32>
    %c0_57 = arith.constant 0 : index
    %c0_58 = arith.constant 0 : index
    %199 = vector.load %arg5[%c0_57, %c0_58] : memref<32x128xf32, #tpu.memory_space<vmem>>, vector<32x128xf32>
    %cst_59 = arith.constant dense<0.000000e+00> : vector<64x128xf32>
    %200 = tpu.matmul %198, %199, %cst_59 {dimension_numbers = #tpu.dot_dimension_numbers<[1], [0], [0], [1], [0, 0, 1, 1], [], []>} : vector<64x32xf32>, vector<32x128xf32>, vector<64x128xf32> -> vector<64x128xf32>
    %201 = vector.broadcast %197 : vector<1x128xf32> to vector<64x128xf32>
    %202 = arith.addf %200, %201 : vector<64x128xf32>
    %c0_60 = arith.constant 0 : index
    %c0_61 = arith.constant 0 : index
    %203 = vector.load %arg11[%c0_60, %c0_61] : memref<64x128xf32, #tpu.memory_space<vmem>>, vector<64x128xf32>
    tpu.vector_store %arg11[%c0_60, %c0_61], %202 {strides = array<i32>} : memref<64x128xf32, #tpu.memory_space<vmem>>, vector<64x128xf32>,
    %c0_62 = arith.constant 0 : index
    %c0_63 = arith.constant 0 : index
    %204 = vector.load %arg11[%c0_62, %c0_63] : memref<64x128xf32, #tpu.memory_space<vmem>>, vector<8x128xf32>
    %cst_64 = arith.constant 0.000000e+00 : f32
    %205 = vector.broadcast %cst_64 : f32 to vector<8x32xf32>
    %206 = vector.extract_strided_slice %204 {offsets = [0, 0], sizes = [8, 96], strides = [1, 1]} : vector<8x128xf32> to vector<8x96xf32>
    %207 = arith.negf %206 : vector<8x96xf32>
    %208 = math.exp %207 : vector<8x96xf32>
    %cst_65 = arith.constant 1.000000e+00 : f32
    %209 = vector.broadcast %cst_65 : f32 to vector<8x96xf32>
    %210 = arith.addf %209, %208 : vector<8x96xf32>
    %211 = arith.divf %209, %210 : vector<8x96xf32>
    %212 = vector.extract_strided_slice %204 {offsets = [0, 96], sizes = [8, 32], strides = [1, 1]} : vector<8x128xf32> to vector<8x32xf32>
    %213 = math.tanh %212 : vector<8x32xf32>
    %214 = vector.extract_strided_slice %211 {offsets = [0, 0], sizes = [8, 32], strides = [1, 1]} : vector<8x96xf32> to vector<8x32xf32>
    %215 = vector.extract_strided_slice %211 {offsets = [0, 32], sizes = [8, 32], strides = [1, 1]} : vector<8x96xf32> to vector<8x32xf32>
    %216 = vector.extract_strided_slice %211 {offsets = [0, 64], sizes = [8, 32], strides = [1, 1]} : vector<8x96xf32> to vector<8x32xf32>
    %217 = arith.mulf %215, %205 : vector<8x32xf32>
    %218 = arith.mulf %214, %213 : vector<8x32xf32>
    %219 = arith.addf %217, %218 : vector<8x32xf32>
    %220 = math.tanh %219 : vector<8x32xf32>
    %221 = arith.mulf %216, %220 : vector<8x32xf32>
    %c1_i32_66 = arith.constant 1 : i32
    %c8_i32_67 = arith.constant 8 : i32
    %222 = arith.muli %c1_i32_66, %c8_i32_67 : i32
    %223 = tpu.assume_multiple %222, 8 : i32
    %224 = arith.index_cast %223 : i32 to index
    %c0_68 = arith.constant 0 : index
    %225 = vector.load %arg11[%224, %c0_68] : memref<64x128xf32, #tpu.memory_space<vmem>>, vector<8x128xf32>
    %cst_69 = arith.constant dense<0.000000e+00> : vector<8x128xf32>
    %226 = tpu.matmul %221, %196, %cst_69 {dimension_numbers = #tpu.dot_dimension_numbers<[1], [0], [0], [1], [0, 0, 1, 1], [], []>} : vector<8x32xf32>, vector<32x128xf32>, vector<8x128xf32> -> vector<8x128xf32>
    %227 = arith.addf %225, %226 : vector<8x128xf32>
    %228 = vector.extract_strided_slice %227 {offsets = [0, 0], sizes = [8, 96], strides = [1, 1]} : vector<8x128xf32> to vector<8x96xf32>
    %229 = arith.negf %228 : vector<8x96xf32>
    %230 = math.exp %229 : vector<8x96xf32>
    %cst_70 = arith.constant 1.000000e+00 : f32
    %231 = vector.broadcast %cst_70 : f32 to vector<8x96xf32>
    %232 = arith.addf %231, %230 : vector<8x96xf32>
    %233 = arith.divf %231, %232 : vector<8x96xf32>
    %234 = vector.extract_strided_slice %227 {offsets = [0, 96], sizes = [8, 32], strides = [1, 1]} : vector<8x128xf32> to vector<8x32xf32>
    %235 = math.tanh %234 : vector<8x32xf32>
    %236 = vector.extract_strided_slice %233 {offsets = [0, 0], sizes = [8, 32], strides = [1, 1]} : vector<8x96xf32> to vector<8x32xf32>
    %237 = vector.extract_strided_slice %233 {offsets = [0, 32], sizes = [8, 32], strides = [1, 1]} : vector<8x96xf32> to vector<8x32xf32>
    %238 = vector.extract_strided_slice %233 {offsets = [0, 64], sizes = [8, 32], strides = [1, 1]} : vector<8x96xf32> to vector<8x32xf32>
    %239 = arith.mulf %237, %219 : vector<8x32xf32>
    %240 = arith.mulf %236, %235 : vector<8x32xf32>
    %241 = arith.addf %239, %240 : vector<8x32xf32>
    %242 = math.tanh %241 : vector<8x32xf32>
    %243 = arith.mulf %238, %242 : vector<8x32xf32>
    %c2_i32_71 = arith.constant 2 : i32
    %c8_i32_72 = arith.constant 8 : i32
    %244 = arith.muli %c2_i32_71, %c8_i32_72 : i32
    %245 = tpu.assume_multiple %244, 8 : i32
    %246 = arith.index_cast %245 : i32 to index
    %c0_73 = arith.constant 0 : index
    %247 = vector.load %arg11[%246, %c0_73] : memref<64x128xf32, #tpu.memory_space<vmem>>, vector<8x128xf32>
    %cst_74 = arith.constant dense<0.000000e+00> : vector<8x128xf32>
    %248 = tpu.matmul %243, %196, %cst_74 {dimension_numbers = #tpu.dot_dimension_numbers<[1], [0], [0], [1], [0, 0, 1, 1], [], []>} : vector<8x32xf32>, vector<32x128xf32>, vector<8x128xf32> -> vector<8x128xf32>
    %249 = arith.addf %247, %248 : vector<8x128xf32>
    %250 = vector.extract_strided_slice %249 {offsets = [0, 0], sizes = [8, 96], strides = [1, 1]} : vector<8x128xf32> to vector<8x96xf32>
    %251 = arith.negf %250 : vector<8x96xf32>
    %252 = math.exp %251 : vector<8x96xf32>
    %cst_75 = arith.constant 1.000000e+00 : f32
    %253 = vector.broadcast %cst_75 : f32 to vector<8x96xf32>
    %254 = arith.addf %253, %252 : vector<8x96xf32>
    %255 = arith.divf %253, %254 : vector<8x96xf32>
    %256 = vector.extract_strided_slice %249 {offsets = [0, 96], sizes = [8, 32], strides = [1, 1]} : vector<8x128xf32> to vector<8x32xf32>
    %257 = math.tanh %256 : vector<8x32xf32>
    %258 = vector.extract_strided_slice %255 {offsets = [0, 0], sizes = [8, 32], strides = [1, 1]} : vector<8x96xf32> to vector<8x32xf32>
    %259 = vector.extract_strided_slice %255 {offsets = [0, 32], sizes = [8, 32], strides = [1, 1]} : vector<8x96xf32> to vector<8x32xf32>
    %260 = vector.extract_strided_slice %255 {offsets = [0, 64], sizes = [8, 32], strides = [1, 1]} : vector<8x96xf32> to vector<8x32xf32>
    %261 = arith.mulf %259, %241 : vector<8x32xf32>
    %262 = arith.mulf %258, %257 : vector<8x32xf32>
    %263 = arith.addf %261, %262 : vector<8x32xf32>
    %264 = math.tanh %263 : vector<8x32xf32>
    %265 = arith.mulf %260, %264 : vector<8x32xf32>
    %c3_i32_76 = arith.constant 3 : i32
    %c8_i32_77 = arith.constant 8 : i32
    %266 = arith.muli %c3_i32_76, %c8_i32_77 : i32
    %267 = tpu.assume_multiple %266, 8 : i32
    %268 = arith.index_cast %267 : i32 to index
    %c0_78 = arith.constant 0 : index
    %269 = vector.load %arg11[%268, %c0_78] : memref<64x128xf32, #tpu.memory_space<vmem>>, vector<8x128xf32>
    %cst_79 = arith.constant dense<0.000000e+00> : vector<8x128xf32>
    %270 = tpu.matmul %265, %196, %cst_79 {dimension_numbers = #tpu.dot_dimension_numbers<[1], [0], [0], [1], [0, 0, 1, 1], [], []>} : vector<8x32xf32>, vector<32x128xf32>, vector<8x128xf32> -> vector<8x128xf32>
    %271 = arith.addf %269, %270 : vector<8x128xf32>
    %272 = vector.extract_strided_slice %271 {offsets = [0, 0], sizes = [8, 96], strides = [1, 1]} : vector<8x128xf32> to vector<8x96xf32>
    %273 = arith.negf %272 : vector<8x96xf32>
    %274 = math.exp %273 : vector<8x96xf32>
    %cst_80 = arith.constant 1.000000e+00 : f32
    %275 = vector.broadcast %cst_80 : f32 to vector<8x96xf32>
    %276 = arith.addf %275, %274 : vector<8x96xf32>
    %277 = arith.divf %275, %276 : vector<8x96xf32>
    %278 = vector.extract_strided_slice %271 {offsets = [0, 96], sizes = [8, 32], strides = [1, 1]} : vector<8x128xf32> to vector<8x32xf32>
    %279 = math.tanh %278 : vector<8x32xf32>
    %280 = vector.extract_strided_slice %277 {offsets = [0, 0], sizes = [8, 32], strides = [1, 1]} : vector<8x96xf32> to vector<8x32xf32>
    %281 = vector.extract_strided_slice %277 {offsets = [0, 32], sizes = [8, 32], strides = [1, 1]} : vector<8x96xf32> to vector<8x32xf32>
    %282 = vector.extract_strided_slice %277 {offsets = [0, 64], sizes = [8, 32], strides = [1, 1]} : vector<8x96xf32> to vector<8x32xf32>
    %283 = arith.mulf %281, %263 : vector<8x32xf32>
    %284 = arith.mulf %280, %279 : vector<8x32xf32>
    %285 = arith.addf %283, %284 : vector<8x32xf32>
    %286 = math.tanh %285 : vector<8x32xf32>
    %287 = arith.mulf %282, %286 : vector<8x32xf32>
    %c4_i32_81 = arith.constant 4 : i32
    %c8_i32_82 = arith.constant 8 : i32
    %288 = arith.muli %c4_i32_81, %c8_i32_82 : i32
    %289 = tpu.assume_multiple %288, 8 : i32
    %290 = arith.index_cast %289 : i32 to index
    %c0_83 = arith.constant 0 : index
    %291 = vector.load %arg11[%290, %c0_83] : memref<64x128xf32, #tpu.memory_space<vmem>>, vector<8x128xf32>
    %cst_84 = arith.constant dense<0.000000e+00> : vector<8x128xf32>
    %292 = tpu.matmul %287, %196, %cst_84 {dimension_numbers = #tpu.dot_dimension_numbers<[1], [0], [0], [1], [0, 0, 1, 1], [], []>} : vector<8x32xf32>, vector<32x128xf32>, vector<8x128xf32> -> vector<8x128xf32>
    %293 = arith.addf %291, %292 : vector<8x128xf32>
    %294 = vector.extract_strided_slice %293 {offsets = [0, 0], sizes = [8, 96], strides = [1, 1]} : vector<8x128xf32> to vector<8x96xf32>
    %295 = arith.negf %294 : vector<8x96xf32>
    %296 = math.exp %295 : vector<8x96xf32>
    %cst_85 = arith.constant 1.000000e+00 : f32
    %297 = vector.broadcast %cst_85 : f32 to vector<8x96xf32>
    %298 = arith.addf %297, %296 : vector<8x96xf32>
    %299 = arith.divf %297, %298 : vector<8x96xf32>
    %300 = vector.extract_strided_slice %293 {offsets = [0, 96], sizes = [8, 32], strides = [1, 1]} : vector<8x128xf32> to vector<8x32xf32>
    %301 = math.tanh %300 : vector<8x32xf32>
    %302 = vector.extract_strided_slice %299 {offsets = [0, 0], sizes = [8, 32], strides = [1, 1]} : vector<8x96xf32> to vector<8x32xf32>
    %303 = vector.extract_strided_slice %299 {offsets = [0, 32], sizes = [8, 32], strides = [1, 1]} : vector<8x96xf32> to vector<8x32xf32>
    %304 = vector.extract_strided_slice %299 {offsets = [0, 64], sizes = [8, 32], strides = [1, 1]} : vector<8x96xf32> to vector<8x32xf32>
    %305 = arith.mulf %303, %285 : vector<8x32xf32>
    %306 = arith.mulf %302, %301 : vector<8x32xf32>
    %307 = arith.addf %305, %306 : vector<8x32xf32>
    %308 = math.tanh %307 : vector<8x32xf32>
    %309 = arith.mulf %304, %308 : vector<8x32xf32>
    %c5_i32_86 = arith.constant 5 : i32
    %c8_i32_87 = arith.constant 8 : i32
    %310 = arith.muli %c5_i32_86, %c8_i32_87 : i32
    %311 = tpu.assume_multiple %310, 8 : i32
    %312 = arith.index_cast %311 : i32 to index
    %c0_88 = arith.constant 0 : index
    %313 = vector.load %arg11[%312, %c0_88] : memref<64x128xf32, #tpu.memory_space<vmem>>, vector<8x128xf32>
    %cst_89 = arith.constant dense<0.000000e+00> : vector<8x128xf32>
    %314 = tpu.matmul %309, %196, %cst_89 {dimension_numbers = #tpu.dot_dimension_numbers<[1], [0], [0], [1], [0, 0, 1, 1], [], []>} : vector<8x32xf32>, vector<32x128xf32>, vector<8x128xf32> -> vector<8x128xf32>
    %315 = arith.addf %313, %314 : vector<8x128xf32>
    %316 = vector.extract_strided_slice %315 {offsets = [0, 0], sizes = [8, 96], strides = [1, 1]} : vector<8x128xf32> to vector<8x96xf32>
    %317 = arith.negf %316 : vector<8x96xf32>
    %318 = math.exp %317 : vector<8x96xf32>
    %cst_90 = arith.constant 1.000000e+00 : f32
    %319 = vector.broadcast %cst_90 : f32 to vector<8x96xf32>
    %320 = arith.addf %319, %318 : vector<8x96xf32>
    %321 = arith.divf %319, %320 : vector<8x96xf32>
    %322 = vector.extract_strided_slice %315 {offsets = [0, 96], sizes = [8, 32], strides = [1, 1]} : vector<8x128xf32> to vector<8x32xf32>
    %323 = math.tanh %322 : vector<8x32xf32>
    %324 = vector.extract_strided_slice %321 {offsets = [0, 0], sizes = [8, 32], strides = [1, 1]} : vector<8x96xf32> to vector<8x32xf32>
    %325 = vector.extract_strided_slice %321 {offsets = [0, 32], sizes = [8, 32], strides = [1, 1]} : vector<8x96xf32> to vector<8x32xf32>
    %326 = vector.extract_strided_slice %321 {offsets = [0, 64], sizes = [8, 32], strides = [1, 1]} : vector<8x96xf32> to vector<8x32xf32>
    %327 = arith.mulf %325, %307 : vector<8x32xf32>
    %328 = arith.mulf %324, %323 : vector<8x32xf32>
    %329 = arith.addf %327, %328 : vector<8x32xf32>
    %330 = math.tanh %329 : vector<8x32xf32>
    %331 = arith.mulf %326, %330 : vector<8x32xf32>
    %c6_i32_91 = arith.constant 6 : i32
    %c8_i32_92 = arith.constant 8 : i32
    %332 = arith.muli %c6_i32_91, %c8_i32_92 : i32
    %333 = tpu.assume_multiple %332, 8 : i32
    %334 = arith.index_cast %333 : i32 to index
    %c0_93 = arith.constant 0 : index
    %335 = vector.load %arg11[%334, %c0_93] : memref<64x128xf32, #tpu.memory_space<vmem>>, vector<8x128xf32>
    %cst_94 = arith.constant dense<0.000000e+00> : vector<8x128xf32>
    %336 = tpu.matmul %331, %196, %cst_94 {dimension_numbers = #tpu.dot_dimension_numbers<[1], [0], [0], [1], [0, 0, 1, 1], [], []>} : vector<8x32xf32>, vector<32x128xf32>, vector<8x128xf32> -> vector<8x128xf32>
    %337 = arith.addf %335, %336 : vector<8x128xf32>
    %338 = vector.extract_strided_slice %337 {offsets = [0, 0], sizes = [8, 96], strides = [1, 1]} : vector<8x128xf32> to vector<8x96xf32>
    %339 = arith.negf %338 : vector<8x96xf32>
    %340 = math.exp %339 : vector<8x96xf32>
    %cst_95 = arith.constant 1.000000e+00 : f32
    %341 = vector.broadcast %cst_95 : f32 to vector<8x96xf32>
    %342 = arith.addf %341, %340 : vector<8x96xf32>
    %343 = arith.divf %341, %342 : vector<8x96xf32>
    %344 = vector.extract_strided_slice %337 {offsets = [0, 96], sizes = [8, 32], strides = [1, 1]} : vector<8x128xf32> to vector<8x32xf32>
    %345 = math.tanh %344 : vector<8x32xf32>
    %346 = vector.extract_strided_slice %343 {offsets = [0, 0], sizes = [8, 32], strides = [1, 1]} : vector<8x96xf32> to vector<8x32xf32>
    %347 = vector.extract_strided_slice %343 {offsets = [0, 32], sizes = [8, 32], strides = [1, 1]} : vector<8x96xf32> to vector<8x32xf32>
    %348 = vector.extract_strided_slice %343 {offsets = [0, 64], sizes = [8, 32], strides = [1, 1]} : vector<8x96xf32> to vector<8x32xf32>
    %349 = arith.mulf %347, %329 : vector<8x32xf32>
    %350 = arith.mulf %346, %345 : vector<8x32xf32>
    %351 = arith.addf %349, %350 : vector<8x32xf32>
    %352 = math.tanh %351 : vector<8x32xf32>
    %353 = arith.mulf %348, %352 : vector<8x32xf32>
    %c7_i32_96 = arith.constant 7 : i32
    %c8_i32_97 = arith.constant 8 : i32
    %354 = arith.muli %c7_i32_96, %c8_i32_97 : i32
    %355 = tpu.assume_multiple %354, 8 : i32
    %356 = arith.index_cast %355 : i32 to index
    %c0_98 = arith.constant 0 : index
    %357 = vector.load %arg11[%356, %c0_98] : memref<64x128xf32, #tpu.memory_space<vmem>>, vector<8x128xf32>
    %cst_99 = arith.constant dense<0.000000e+00> : vector<8x128xf32>
    %358 = tpu.matmul %353, %196, %cst_99 {dimension_numbers = #tpu.dot_dimension_numbers<[1], [0], [0], [1], [0, 0, 1, 1], [], []>} : vector<8x32xf32>, vector<32x128xf32>, vector<8x128xf32> -> vector<8x128xf32>
    %359 = arith.addf %357, %358 : vector<8x128xf32>
    %360 = vector.extract_strided_slice %359 {offsets = [0, 0], sizes = [8, 96], strides = [1, 1]} : vector<8x128xf32> to vector<8x96xf32>
    %361 = arith.negf %360 : vector<8x96xf32>
    %362 = math.exp %361 : vector<8x96xf32>
    %cst_100 = arith.constant 1.000000e+00 : f32
    %363 = vector.broadcast %cst_100 : f32 to vector<8x96xf32>
    %364 = arith.addf %363, %362 : vector<8x96xf32>
    %365 = arith.divf %363, %364 : vector<8x96xf32>
    %366 = vector.extract_strided_slice %359 {offsets = [0, 96], sizes = [8, 32], strides = [1, 1]} : vector<8x128xf32> to vector<8x32xf32>
    %367 = math.tanh %366 : vector<8x32xf32>
    %368 = vector.extract_strided_slice %365 {offsets = [0, 0], sizes = [8, 32], strides = [1, 1]} : vector<8x96xf32> to vector<8x32xf32>
    %369 = vector.extract_strided_slice %365 {offsets = [0, 32], sizes = [8, 32], strides = [1, 1]} : vector<8x96xf32> to vector<8x32xf32>
    %370 = vector.extract_strided_slice %365 {offsets = [0, 64], sizes = [8, 32], strides = [1, 1]} : vector<8x96xf32> to vector<8x32xf32>
    %371 = arith.mulf %369, %351 : vector<8x32xf32>
    %372 = arith.mulf %368, %367 : vector<8x32xf32>
    %373 = arith.addf %371, %372 : vector<8x32xf32>
    %374 = math.tanh %373 : vector<8x32xf32>
    %375 = arith.mulf %370, %374 : vector<8x32xf32>
    %c7_i32_101 = arith.constant 7 : i32
    %c0_102 = arith.constant 0 : index
    %c0_103 = arith.constant 0 : index
    %376 = vector.load %arg8[%c0_102, %c0_103] : memref<64x4xf32, #tpu.memory_space<vmem>>, vector<32x4xf32>
    %cst_104 = arith.constant dense<0.000000e+00> : vector<8x4xf32>
    %377 = tpu.matmul %221, %376, %cst_104 {dimension_numbers = #tpu.dot_dimension_numbers<[1], [0], [0], [1], [0, 0, 1, 1], [], []>} : vector<8x32xf32>, vector<32x4xf32>, vector<8x4xf32> -> vector<8x4xf32>
    %c32 = arith.constant 32 : index
    %c0_105 = arith.constant 0 : index
    %378 = vector.load %arg8[%c32, %c0_105] : memref<64x4xf32, #tpu.memory_space<vmem>>, vector<32x4xf32>
    %cst_106 = arith.constant dense<0.000000e+00> : vector<8x4xf32>
    %379 = tpu.matmul %375, %378, %cst_106 {dimension_numbers = #tpu.dot_dimension_numbers<[1], [0], [0], [1], [0, 0, 1, 1], [], []>} : vector<8x32xf32>, vector<32x4xf32>, vector<8x4xf32> -> vector<8x4xf32>
    %380 = arith.addf %377, %379 : vector<8x4xf32>
    %c0_107 = arith.constant 0 : index
    %c0_108 = arith.constant 0 : index
    %381 = vector.load %arg9[%c0_107, %c0_108] : memref<1x4xf32, #tpu.memory_space<vmem>>, vector<1x4xf32>
    %382 = vector.broadcast %381 : vector<1x4xf32> to vector<8x4xf32>
    %383 = arith.addf %380, %382 : vector<8x4xf32>
    %c0_109 = arith.constant 0 : index
    %c0_110 = arith.constant 0 : index
    %384 = vector.load %arg10[%c0_109, %c0_110] : memref<8x4xf32, #tpu.memory_space<vmem>>, vector<8x4xf32>
    tpu.vector_store %arg10[%c0_109, %c0_110], %383 {strides = array<i32>} : memref<8x4xf32, #tpu.memory_space<vmem>>, vector<8x4xf32>,
    return
  }
  func.func @transform_0(%arg0: i32) -> (i32, i32, i32) {
    %c0_i32 = arith.constant 0 : i32
    %c0_i32_0 = arith.constant 0 : i32
    %c0_i32_1 = arith.constant 0 : i32
    return %arg0, %c0_i32, %c0_i32_0 : i32, i32, i32
  }
  func.func @transform_1(%arg0: i32) -> (i32, i32) {
    %c0_i32 = arith.constant 0 : i32
    %c0_i32_0 = arith.constant 0 : i32
    %c0_i32_1 = arith.constant 0 : i32
    return %c0_i32, %c0_i32_0 : i32, i32
  }
  func.func @transform_2(%arg0: i32) -> (i32, i32) {
    %c0_i32 = arith.constant 0 : i32
    %c0_i32_0 = arith.constant 0 : i32
    %c0_i32_1 = arith.constant 0 : i32
    return %c0_i32, %c0_i32_0 : i32, i32
  }
  func.func @transform_3(%arg0: i32) -> (i32, i32) {
    %c0_i32 = arith.constant 0 : i32
    %c0_i32_0 = arith.constant 0 : i32
    %c0_i32_1 = arith.constant 0 : i32
    return %c0_i32, %c0_i32_0 : i32, i32
  }
  func.func @transform_4(%arg0: i32) -> (i32, i32) {
    %c0_i32 = arith.constant 0 : i32
    %c0_i32_0 = arith.constant 0 : i32
    %c0_i32_1 = arith.constant 0 : i32
    return %c0_i32, %c0_i32_0 : i32, i32
  }
  func.func @transform_5(%arg0: i32) -> (i32, i32) {
    %c0_i32 = arith.constant 0 : i32
    %c0_i32_0 = arith.constant 0 : i32
    %c0_i32_1 = arith.constant 0 : i32
    return %c0_i32, %c0_i32_0 : i32, i32
  }
  func.func @transform_6(%arg0: i32) -> (i32, i32) {
    %c0_i32 = arith.constant 0 : i32
    %c0_i32_0 = arith.constant 0 : i32
    %c0_i32_1 = arith.constant 0 : i32
    return %c0_i32, %c0_i32_0 : i32, i32
  }
  func.func @transform_7(%arg0: i32) -> (i32, i32) {
    %c0_i32 = arith.constant 0 : i32
    %c0_i32_0 = arith.constant 0 : i32
    %c0_i32_1 = arith.constant 0 : i32
    return %c0_i32, %c0_i32_0 : i32, i32
  }
  func.func @transform_8(%arg0: i32) -> (i32, i32) {
    %c0_i32 = arith.constant 0 : i32
    %c0_i32_0 = arith.constant 0 : i32
    %c0_i32_1 = arith.constant 0 : i32
    return %c0_i32, %c0_i32_0 : i32, i32
  }
  func.func @transform_9(%arg0: i32) -> (i32, i32) {
    %c0_i32 = arith.constant 0 : i32
    %c0_i32_0 = arith.constant 0 : i32
    return %arg0, %c0_i32 : i32, i32
  }
}

</mosaic_0001>

<llo_original>
// kernel: net_forward.1
$region0: #{net_forward.1}
  #allocation0 [shape = 'u32[]', space=smem, size = 0x4, offset = 0x4, fixed_abs, tag = 'smem constant byte address 0x4 - core index']
  #allocation1 [shape = 'u32[144,128]{1,0:T(1,128)}', space=vmem, size = 0x12000, scoped, tag = 'internal scratch']
  #allocation2 [shape = 'f32[64,128]{1,0:T(8,128)}', space=vmem, size = 0x8000, scoped, tag = 'scratch operand']
  #allocation3 [shape = 'f32[64,32]{1,0:T(8,128)}', space=vmem, size = 0x8000, scoped, tag = 'scratch operand']
  %s0 = inlined_call_operand.vmem [shape: f32[1,64,32], index: 0, kind: input, shape index: {}]
  %s1 = inlined_call_operand.vmem [shape: f32[32,128], index: 1, kind: input, shape index: {}]
  %s2 = inlined_call_operand.vmem [shape: f32[32,128], index: 2, kind: input, shape index: {}]
  %s3 = inlined_call_operand.vmem [shape: f32[1,128], index: 3, kind: input, shape index: {}]
  %s4 = inlined_call_operand.vmem [shape: f32[32,128], index: 4, kind: input, shape index: {}]
  %s5 = inlined_call_operand.vmem [shape: f32[32,128], index: 5, kind: input, shape index: {}]
  %s6 = inlined_call_operand.vmem [shape: f32[1,128], index: 6, kind: input, shape index: {}]
  %s7 = inlined_call_operand.vmem [shape: f32[64,4], index: 7, kind: input, shape index: {}]
  %s8 = inlined_call_operand.vmem [shape: f32[1,4], index: 8, kind: input, shape index: {}]
  %s9 = inlined_call_operand.vmem [shape: f32[8,4], index: 9, kind: output, shape index: {}]
  %s10 = sld [smem:[#allocation0]]
  $region46: #{net_forward.1} parent=0
    _
  %s12 = ssub.s32 1, %s10
  %s13 = scalar_select 0, %s12, %s10
  // Predicated region
  $region2: #{net_forward.1} parent=0 // pred_check
    _
  $region3: #{net_forward.1} parent=0 // pred_check_branch
    %15 = sbr.rel (0) target = $region5
  $region4: #{net_forward.1} parent=0 // pred_region
    _
  $region5: #{net_forward.1} parent=0 // pred_fallthru
    _
  // Predicated region
  $region6: #{net_forward.1} parent=0 // pred_check
    _
  $region7: #{net_forward.1} parent=0 // pred_check_branch
    %17 = sbr.rel (0) target = $region9
  $region8: #{net_forward.1} parent=0 // pred_region
    _
  $region9: #{net_forward.1} parent=0 // pred_fallthru
    _
  // Predicated region
  $region10: #{net_forward.1} parent=0 // pred_check
    _
  $region11: #{net_forward.1} parent=0 // pred_check_branch
    %19 = sbr.rel (0) target = $region13
  $region12: #{net_forward.1} parent=0 // pred_region
    _
  $region13: #{net_forward.1} parent=0 // pred_fallthru
    _
  // Predicated region
  $region14: #{net_forward.1} parent=0 // pred_check
    _
  $region15: #{net_forward.1} parent=0 // pred_check_branch
    %21 = sbr.rel (0) target = $region17
  $region16: #{net_forward.1} parent=0 // pred_region
    _
  $region17: #{net_forward.1} parent=0 // pred_fallthru
    _
  // Predicated region
  $region18: #{net_forward.1} parent=0 // pred_check
    _
  $region19: #{net_forward.1} parent=0 // pred_check_branch
    %23 = sbr.rel (0) target = $region21
  $region20: #{net_forward.1} parent=0 // pred_region
    _
  $region21: #{net_forward.1} parent=0 // pred_fallthru
    _
  // Predicated region
  $region22: #{net_forward.1} parent=0 // pred_check
    _
  $region23: #{net_forward.1} parent=0 // pred_check_branch
    %25 = sbr.rel (0) target = $region25
  $region24: #{net_forward.1} parent=0 // pred_region
    _
  $region25: #{net_forward.1} parent=0 // pred_fallthru
    _
  // Predicated region
  $region26: #{net_forward.1} parent=0 // pred_check
    _
  $region27: #{net_forward.1} parent=0 // pred_check_branch
    %27 = sbr.rel (0) target = $region29
  $region28: #{net_forward.1} parent=0 // pred_region
    _
  $region29: #{net_forward.1} parent=0 // pred_fallthru
    _
  // Predicated region
  $region30: #{net_forward.1} parent=0 // pred_check
    _
  $region31: #{net_forward.1} parent=0 // pred_check_branch
    %29 = sbr.rel (0) target = $region33
  $region32: #{net_forward.1} parent=0 // pred_region
    _
  $region33: #{net_forward.1} parent=0 // pred_fallthru
    _
  // Predicated region
  $region34: #{net_forward.1} parent=0 // pred_check
    _
  $region35: #{net_forward.1} parent=0 // pred_check_branch
    %31 = sbr.rel (0) target = $region37
  $region36: #{net_forward.1} parent=0 // pred_region
    _
  $region37: #{net_forward.1} parent=0 // pred_fallthru
    _
  %v32 = vld [vmem:[%s2] sm:$0xff]
  %v33 = vld [vmem:[%s2 + $0x8] sm:$0xff]
  %v34 = vld [vmem:[%s2 + $0x10] sm:$0xff]
  %v35 = vld [vmem:[%s2 + $0x18] sm:$0xff]
  %v36 = vld [vmem:[%s3] sm:$0x1]
  %v37 = vld [vmem:[%s0] sm:$0xff]
  %v38 = vld [vmem:[%s0 + $0x8] sm:$0xff]
  %v39 = vld [vmem:[%s0 + $0x10] sm:$0xff]
  %v40 = vld [vmem:[%s0 + $0x18] sm:$0xff]
  %v41 = vld [vmem:[%s0 + $0x20] sm:$0xff]
  %v42 = vld [vmem:[%s0 + $0x28] sm:$0xff]
  %v43 = vld [vmem:[%s0 + $0x30] sm:$0xff]
  %v44 = vld [vmem:[%s0 + $0x38] sm:$0xff]
  %v45 = vld [vmem:[%s1] sm:$0xff]
  %v46 = vld [vmem:[%s1 + $0x8] sm:$0xff]
  %v47 = vld [vmem:[%s1 + $0x10] sm:$0xff]
  %v48 = vld [vmem:[%s1 + $0x18] sm:$0xff]
  %v50 = vlaneseq
  %v51 = vshrl.u32 %v50, 7
  %v52 = vsub.s32 0, %v51
  %v53 = vrot.slane %v36, %v52
  %vm55 = vcmask 261120
  %v57 = vsel %vm55, %v37, 0
  %v60 = vsel %vm55, %v38, 0
  %v63 = vsel %vm55, %v39, 0
  %v66 = vsel %vm55, %v40, 0
  %v69 = vsel %vm55, %v41, 0
  %v72 = vsel %vm55, %v42, 0
  %v75 = vsel %vm55, %v43, 0
  %v78 = vsel %vm55, %v44, 0
  %80 = vmatprep.subr.mxu0 0.0
  %81 = vmatpush1.msra.mxu0 %v45
  %82 = vmatprep.subr.mxu0 0.0
  %83 = vmatpush1.msra.mxu0 %v46
  %84 = vmatprep.subr.mxu0 0.0
  %85 = vmatpush1.msra.mxu0 %v47
  %86 = vmatprep.subr.mxu0 0.0
  %87 = vmatpush1.msra.mxu0 %v48
  %88 = vmatprep.subr.mxu0 0.0
  %89 = vmatpush1.msra.mxu0 0.0
  %90 = vmatprep.subr.mxu0 0.0
  %91 = vmatpush1.msra.mxu0 0.0
  %92 = vmatprep.subr.mxu0 0.0
  %93 = vmatpush1.msra.mxu0 0.0
  %94 = vmatprep.subr.mxu0 0.0
  %95 = vmatpush1.msra.mxu0 0.0
  %96 = vmatprep.subr.mxu0 0.0
  %97 = vmatpush1.msra.mxu0 0.0
  %98 = vmatprep.subr.mxu0 0.0
  %99 = vmatpush1.msra.mxu0 0.0
  %100 = vmatprep.subr.mxu0 0.0
  %101 = vmatpush1.msra.mxu0 0.0
  %102 = vmatprep.subr.mxu0 0.0
  %103 = vmatpush1.msra.mxu0 0.0
  %104 = vmatprep.subr.mxu0 0.0
  %105 = vmatpush1.msra.mxu0 0.0
  %106 = vmatprep.subr.mxu0 0.0
  %107 = vmatpush1.msra.mxu0 0.0
  %108 = vmatprep.subr.mxu0 0.0
  %109 = vmatpush1.msra.mxu0 0.0
  %110 = vmatprep.subr.mxu0 0.0
  %111 = vmatpush1.msra.mxu0 0.0
  %112 = vmatprep.subr.mxu0 0.0
  %113 = vmatpush1.msra.mxu0 0.0
  %114 = vmatprep.subr.mxu0 0.0
  %115 = vmatpush1.msra.mxu0 0.0
  %116 = vmatprep.subr.mxu0 0.0
  %117 = vmatpush1.msra.mxu0 0.0
  %118 = vmatprep.subr.mxu0 0.0
  %119 = vmatpush1.msra.mxu0 0.0
  %120 = vmatprep.subr.mxu0 0.0
  %121 = vmatpush1.msra.mxu0 0.0
  %122 = vmatprep.subr.mxu0 0.0
  %123 = vmatpush1.msra.mxu0 0.0
  %124 = vmatprep.subr.mxu0 0.0
  %125 = vmatpush1.msra.mxu0 0.0
  %126 = vmatprep.subr.mxu0 0.0
  %127 = vmatpush1.msra.mxu0 0.0
  %128 = vmatprep.subr.mxu0 0.0
  %129 = vmatpush1.msra.mxu0 0.0
  %130 = vmatprep.subr.mxu0 0.0
  %131 = vmatpush1.msra.mxu0 0.0
  %132 = vmatprep.subr.mxu0 0.0
  %133 = vmatpush1.msra.mxu0 0.0
  %134 = vmatprep.subr.mxu0 0.0
  %135 = vmatpush1.msra.mxu0 0.0
  %136 = vmatprep.subr.mxu0 0.0
  %137 = vmatpush1.msra.mxu0 0.0
  %138 = vmatprep.subr.mxu0 0.0
  %139 = vmatpush1.msra.mxu0 0.0
  %140 = vmatprep.subr.mxu0 0.0
  %141 = vmatpush1.msra.mxu0 0.0
  %142 = vmatprep.subr.mxu0 0.0
  %143 = vmatpush1.msra.mxu0 0.0
  %144 = vmatprep.mubr.f32.mxu0 0.0
  %145 = vmatmul.mubr.f32.gmra.mrb[0].mxu0 %v57
  %v146 = vpop.f32.mrb[0].mxu0
  %v147 = vadd.f32 %v53, %v146
  %v148 = vpop.f32.mrb[0].mxu0
  %149 = vmatprep.mubr.f32.mxu0 0.0
  %150 = vmatmul.mubr.f32.gmra.mrb[0].mxu0 %v60
  %v151 = vpop.f32.mrb[0].mxu0
  %v152 = vadd.f32 %v53, %v151
  %v153 = vpop.f32.mrb[0].mxu0
  %154 = vmatprep.mubr.f32.mxu0 0.0
  %155 = vmatmul.mubr.f32.gmra.mrb[0].mxu0 %v63
  %v156 = vpop.f32.mrb[0].mxu0
  %v157 = vadd.f32 %v53, %v156
  %v158 = vpop.f32.mrb[0].mxu0
  %159 = vmatprep.mubr.f32.mxu0 0.0
  %160 = vmatmul.mubr.f32.gmra.mrb[0].mxu0 %v66
  %v161 = vpop.f32.mrb[0].mxu0
  %v162 = vadd.f32 %v53, %v161
  %v163 = vpop.f32.mrb[0].mxu0
  %164 = vmatprep.mubr.f32.mxu0 0.0
  %165 = vmatmul.mubr.f32.gmra.mrb[0].mxu0 %v69
  %v166 = vpop.f32.mrb[0].mxu0
  %v167 = vadd.f32 %v53, %v166
  %v168 = vpop.f32.mrb[0].mxu0
  %169 = vmatprep.mubr.f32.mxu0 0.0
  %170 = vmatmul.mubr.f32.gmra.mrb[0].mxu0 %v72
  %v171 = vpop.f32.mrb[0].mxu0
  %v172 = vadd.f32 %v53, %v171
  %v173 = vpop.f32.mrb[0].mxu0
  %174 = vmatprep.mubr.f32.mxu0 0.0
  %175 = vmatmul.mubr.f32.gmra.mrb[0].mxu0 %v75
  %v176 = vpop.f32.mrb[0].mxu0
  %v177 = vadd.f32 %v53, %v176
  %v178 = vpop.f32.mrb[0].mxu0
  %179 = vmatprep.mubr.f32.mxu0 0.0
  %180 = vmatmul.mubr.f32.gmra.mrb[0].mxu0 %v78
  %v181 = vpop.f32.mrb[0].mxu0
  %v182 = vadd.f32 %v53, %v181
  %v183 = vpop.f32.mrb[0].mxu0
  %184 = vdwg.mxu0
  %185 = vst [vmem:[#allocation2] sm:$0xff] %v147
  %186 = vst [vmem:[#allocation2 + $0x8] sm:$0xff] %v152
  %187 = vst [vmem:[#allocation2 + $0x10] sm:$0xff] %v157
  %188 = vst [vmem:[#allocation2 + $0x18] sm:$0xff] %v162
  %189 = vst [vmem:[#allocation2 + $0x20] sm:$0xff] %v167
  %190 = vst [vmem:[#allocation2 + $0x28] sm:$0xff] %v172
  %191 = vst [vmem:[#allocation2 + $0x30] sm:$0xff] %v177
  %192 = vst [vmem:[#allocation2 + $0x38] sm:$0xff] %v182
  %v193 = vld [vmem:[#allocation2] sm:$0xff]
  %v194 = vxor.u32 %v193, 2147483648
  %v195 = vmul.f32 %v194, 1.442695
  %v196 = vpow.pop %v195
  %v197 = vadd.f32 %v196, 1.0
  %v198 = vrcp.pop %v197
  %v199 = vmul.f32 1.0, %v198
  %v200 = vtanh.pop %v193
  %v201 = vmul.f32 %v199, 0.0
  %203 = vrot.lane.b32.xlu0 %v200, 32
  %v204 = vpop.permute.xlu0 %203
  %v206 = vmul.f32 %v199, %v204
  %208 = vrot.lane.b32.xlu0 %v206, 32
  %v209 = vpop.permute.xlu0 %208
  %v211 = vadd.f32 %v201, %v209
  %v212 = vtanh.pop %v211
  %214 = vrot.lane.b32.xlu0 %v212, 32
  %v215 = vpop.permute.xlu0 %214
  %v217 = vmul.f32 %v199, %v215
  %219 = vrot.lane.b32.xlu0 %v217, 64
  %v220 = vpop.permute.xlu0 %219
  %222 = vst.msk [vmem:[#allocation3] sm:$0xff] %vm55, %v220
  %s223 = scalar_lea.vmem [#allocation2], 8
  %v224 = vld [vmem:[%s223] sm:$0xff]
  %v225 = vsel %vm55, %v220, 0
  %227 = vmatprep.subr.mxu0 0.0
  %228 = vmatpush1.msra.mxu0 %v32
  %229 = vmatprep.subr.mxu0 0.0
  %230 = vmatpush1.msra.mxu0 %v33
  %231 = vmatprep.subr.mxu0 0.0
  %232 = vmatpush1.msra.mxu0 %v34
  %233 = vmatprep.subr.mxu0 0.0
  %234 = vmatpush1.msra.mxu0 %v35
  %235 = vmatprep.subr.mxu0 0.0
  %236 = vmatpush1.msra.mxu0 0.0
  %237 = vmatprep.subr.mxu0 0.0
  %238 = vmatpush1.msra.mxu0 0.0
  %239 = vmatprep.subr.mxu0 0.0
  %240 = vmatpush1.msra.mxu0 0.0
  %241 = vmatprep.subr.mxu0 0.0
  %242 = vmatpush1.msra.mxu0 0.0
  %243 = vmatprep.subr.mxu0 0.0
  %244 = vmatpush1.msra.mxu0 0.0
  %245 = vmatprep.subr.mxu0 0.0
  %246 = vmatpush1.msra.mxu0 0.0
  %247 = vmatprep.subr.mxu0 0.0
  %248 = vmatpush1.msra.mxu0 0.0
  %249 = vmatprep.subr.mxu0 0.0
  %250 = vmatpush1.msra.mxu0 0.0
  %251 = vmatprep.subr.mxu0 0.0
  %252 = vmatpush1.msra.mxu0 0.0
  %253 = vmatprep.subr.mxu0 0.0
  %254 = vmatpush1.msra.mxu0 0.0
  %255 = vmatprep.subr.mxu0 0.0
  %256 = vmatpush1.msra.mxu0 0.0
  %257 = vmatprep.subr.mxu0 0.0
  %258 = vmatpush1.msra.mxu0 0.0
  %259 = vmatprep.subr.mxu0 0.0
  %260 = vmatpush1.msra.mxu0 0.0
  %261 = vmatprep.subr.mxu0 0.0
  %262 = vmatpush1.msra.mxu0 0.0
  %263 = vmatprep.subr.mxu0 0.0
  %264 = vmatpush1.msra.mxu0 0.0
  %265 = vmatprep.subr.mxu0 0.0
  %266 = vmatpush1.msra.mxu0 0.0
  %267 = vmatprep.subr.mxu0 0.0
  %268 = vmatpush1.msra.mxu0 0.0
  %269 = vmatprep.subr.mxu0 0.0
  %270 = vmatpush1.msra.mxu0 0.0
  %271 = vmatprep.subr.mxu0 0.0
  %272 = vmatpush1.msra.mxu0 0.0
  %273 = vmatprep.subr.mxu0 0.0
  %274 = vmatpush1.msra.mxu0 0.0
  %275 = vmatprep.subr.mxu0 0.0
  %276 = vmatpush1.msra.mxu0 0.0
  %277 = vmatprep.subr.mxu0 0.0
  %278 = vmatpush1.msra.mxu0 0.0
  %279 = vmatprep.subr.mxu0 0.0
  %280 = vmatpush1.msra.mxu0 0.0
  %281 = vmatprep.subr.mxu0 0.0
  %282 = vmatpush1.msra.mxu0 0.0
  %283 = vmatprep.subr.mxu0 0.0
  %284 = vmatpush1.msra.mxu0 0.0
  %285 = vmatprep.subr.mxu0 0.0
  %286 = vmatpush1.msra.mxu0 0.0
  %287 = vmatprep.subr.mxu0 0.0
  %288 = vmatpush1.msra.mxu0 0.0
  %289 = vmatprep.subr.mxu0 0.0
  %290 = vmatpush1.msra.mxu0 0.0
  %291 = vmatprep.mubr.f32.mxu0 0.0
  %292 = vmatmul.mubr.f32.gmra.mrb[0].mxu0 %v225
  %v293 = vpop.f32.mrb[0].mxu0
  %v294 = vadd.f32 0.0, %v293
  %v295 = vpop.f32.mrb[0].mxu0
  %296 = vdwg.mxu0
  %v297 = vadd.f32 %v224, %v294
  %v298 = vxor.u32 %v297, 2147483648
  %v299 = vmul.f32 %v298, 1.442695
  %v300 = vpow.pop %v299
  %v301 = vadd.f32 %v300, 1.0
  %v302 = vrcp.pop %v301
  %v303 = vmul.f32 1.0, %v302
  %v304 = vtanh.pop %v297
  %v305 = vmul.f32 %v303, %v211
  %307 = vrot.lane.b32.xlu0 %v304, 32
  %v308 = vpop.permute.xlu0 %307
  %v310 = vmul.f32 %v303, %v308
  %312 = vrot.lane.b32.xlu0 %v310, 32
  %v313 = vpop.permute.xlu0 %312
  %v315 = vadd.f32 %v305, %v313
  %v316 = vtanh.pop %v315
  %318 = vrot.lane.b32.xlu0 %v316, 32
  %v319 = vpop.permute.xlu0 %318
  %v321 = vmul.f32 %v303, %v319
  %323 = vrot.lane.b32.xlu0 %v321, 64
  %v324 = vpop.permute.xlu0 %323
  %s326 = scalar_lea.vmem [#allocation3], 8
  %327 = vst.msk [vmem:[%s326] sm:$0xff] %vm55, %v324
  %s328 = scalar_lea.vmem [#allocation2], 16
  %v329 = vld [vmem:[%s328] sm:$0xff]
  %v330 = vsel %vm55, %v324, 0
  %332 = vmatprep.subr.mxu0 0.0
  %333 = vmatpush1.msra.mxu0 %v32
  %334 = vmatprep.subr.mxu0 0.0
  %335 = vmatpush1.msra.mxu0 %v33
  %336 = vmatprep.subr.mxu0 0.0
  %337 = vmatpush1.msra.mxu0 %v34
  %338 = vmatprep.subr.mxu0 0.0
  %339 = vmatpush1.msra.mxu0 %v35
  %340 = vmatprep.subr.mxu0 0.0
  %341 = vmatpush1.msra.mxu0 0.0
  %342 = vmatprep.subr.mxu0 0.0
  %343 = vmatpush1.msra.mxu0 0.0
  %344 = vmatprep.subr.mxu0 0.0
  %345 = vmatpush1.msra.mxu0 0.0
  %346 = vmatprep.subr.mxu0 0.0
  %347 = vmatpush1.msra.mxu0 0.0
  %348 = vmatprep.subr.mxu0 0.0
  %349 = vmatpush1.msra.mxu0 0.0
  %350 = vmatprep.subr.mxu0 0.0
  %351 = vmatpush1.msra.mxu0 0.0
  %352 = vmatprep.subr.mxu0 0.0
  %353 = vmatpush1.msra.mxu0 0.0
  %354 = vmatprep.subr.mxu0 0.0
  %355 = vmatpush1.msra.mxu0 0.0
  %356 = vmatprep.subr.mxu0 0.0
  %357 = vmatpush1.msra.mxu0 0.0
  %358 = vmatprep.subr.mxu0 0.0
  %359 = vmatpush1.msra.mxu0 0.0
  %360 = vmatprep.subr.mxu0 0.0
  %361 = vmatpush1.msra.mxu0 0.0
  %362 = vmatprep.subr.mxu0 0.0
  %363 = vmatpush1.msra.mxu0 0.0
  %364 = vmatprep.subr.mxu0 0.0
  %365 = vmatpush1.msra.mxu0 0.0
  %366 = vmatprep.subr.mxu0 0.0
  %367 = vmatpush1.msra.mxu0 0.0
  %368 = vmatprep.subr.mxu0 0.0
  %369 = vmatpush1.msra.mxu0 0.0
  %370 = vmatprep.subr.mxu0 0.0
  %371 = vmatpush1.msra.mxu0 0.0
  %372 = vmatprep.subr.mxu0 0.0
  %373 = vmatpush1.msra.mxu0 0.0
  %374 = vmatprep.subr.mxu0 0.0
  %375 = vmatpush1.msra.mxu0 0.0
  %376 = vmatprep.subr.mxu0 0.0
  %377 = vmatpush1.msra.mxu0 0.0
  %378 = vmatprep.subr.mxu0 0.0
  %379 = vmatpush1.msra.mxu0 0.0
  %380 = vmatprep.subr.mxu0 0.0
  %381 = vmatpush1.msra.mxu0 0.0
  %382 = vmatprep.subr.mxu0 0.0
  %383 = vmatpush1.msra.mxu0 0.0
  %384 = vmatprep.subr.mxu0 0.0
  %385 = vmatpush1.msra.mxu0 0.0
  %386 = vmatprep.subr.mxu0 0.0
  %387 = vmatpush1.msra.mxu0 0.0
  %388 = vmatprep.subr.mxu0 0.0
  %389 = vmatpush1.msra.mxu0 0.0
  %390 = vmatprep.subr.mxu0 0.0
  %391 = vmatpush1.msra.mxu0 0.0
  %392 = vmatprep.subr.mxu0 0.0
  %393 = vmatpush1.msra.mxu0 0.0
  %394 = vmatprep.subr.mxu0 0.0
  %395 = vmatpush1.msra.mxu0 0.0
  %396 = vmatprep.mubr.f32.mxu0 0.0
  %397 = vmatmul.mubr.f32.gmra.mrb[0].mxu0 %v330
  %v398 = vpop.f32.mrb[0].mxu0
  %v399 = vadd.f32 0.0, %v398
  %v400 = vpop.f32.mrb[0].mxu0
  %401 = vdwg.mxu0
  %v402 = vadd.f32 %v329, %v399
  %v403 = vxor.u32 %v402, 2147483648
  %v404 = vmul.f32 %v403, 1.442695
  %v405 = vpow.pop %v404
  %v406 = vadd.f32 %v405, 1.0
  %v407 = vrcp.pop %v406
  %v408 = vmul.f32 1.0, %v407
  %v409 = vtanh.pop %v402
  %v410 = vmul.f32 %v408, %v315
  %412 = vrot.lane.b32.xlu0 %v409, 32
  %v413 = vpop.permute.xlu0 %412
  %v415 = vmul.f32 %v408, %v413
  %417 = vrot.lane.b32.xlu0 %v415, 32
  %v418 = vpop.permute.xlu0 %417
  %v420 = vadd.f32 %v410, %v418
  %v421 = vtanh.pop %v420
  %423 = vrot.lane.b32.xlu0 %v421, 32
  %v424 = vpop.permute.xlu0 %423
  %v426 = vmul.f32 %v408, %v424
  %428 = vrot.lane.b32.xlu0 %v426, 64
  %v429 = vpop.permute.xlu0 %428
  %s431 = scalar_lea.vmem [#allocation3], 16
  %432 = vst.msk [vmem:[%s431] sm:$0xff] %vm55, %v429
  %s433 = scalar_lea.vmem [#allocation2], 24
  %v434 = vld [vmem:[%s433] sm:$0xff]
  %v435 = vsel %vm55, %v429, 0
  %437 = vmatprep.subr.mxu0 0.0
  %438 = vmatpush1.msra.mxu0 %v32
  %439 = vmatprep.subr.mxu0 0.0
  %440 = vmatpush1.msra.mxu0 %v33
  %441 = vmatprep.subr.mxu0 0.0
  %442 = vmatpush1.msra.mxu0 %v34
  %443 = vmatprep.subr.mxu0 0.0
  %444 = vmatpush1.msra.mxu0 %v35
  %445 = vmatprep.subr.mxu0 0.0
  %446 = vmatpush1.msra.mxu0 0.0
  %447 = vmatprep.subr.mxu0 0.0
  %448 = vmatpush1.msra.mxu0 0.0
  %449 = vmatprep.subr.mxu0 0.0
  %450 = vmatpush1.msra.mxu0 0.0
  %451 = vmatprep.subr.mxu0 0.0
  %452 = vmatpush1.msra.mxu0 0.0
  %453 = vmatprep.subr.mxu0 0.0
  %454 = vmatpush1.msra.mxu0 0.0
  %455 = vmatprep.subr.mxu0 0.0
  %456 = vmatpush1.msra.mxu0 0.0
  %457 = vmatprep.subr.mxu0 0.0
  %458 = vmatpush1.msra.mxu0 0.0
  %459 = vmatprep.subr.mxu0 0.0
  %460 = vmatpush1.msra.mxu0 0.0
  %461 = vmatprep.subr.mxu0 0.0
  %462 = vmatpush1.msra.mxu0 0.0
  %463 = vmatprep.subr.mxu0 0.0
  %464 = vmatpush1.msra.mxu0 0.0
  %465 = vmatprep.subr.mxu0 0.0
  %466 = vmatpush1.msra.mxu0 0.0
  %467 = vmatprep.subr.mxu0 0.0
  %468 = vmatpush1.msra.mxu0 0.0
  %469 = vmatprep.subr.mxu0 0.0
  %470 = vmatpush1.msra.mxu0 0.0
  %471 = vmatprep.subr.mxu0 0.0
  %472 = vmatpush1.msra.mxu0 0.0
  %473 = vmatprep.subr.mxu0 0.0
  %474 = vmatpush1.msra.mxu0 0.0
  %475 = vmatprep.subr.mxu0 0.0
  %476 = vmatpush1.msra.mxu0 0.0
  %477 = vmatprep.subr.mxu0 0.0
  %478 = vmatpush1.msra.mxu0 0.0
  %479 = vmatprep.subr.mxu0 0.0
  %480 = vmatpush1.msra.mxu0 0.0
  %481 = vmatprep.subr.mxu0 0.0
  %482 = vmatpush1.msra.mxu0 0.0
  %483 = vmatprep.subr.mxu0 0.0
  %484 = vmatpush1.msra.mxu0 0.0
  %485 = vmatprep.subr.mxu0 0.0
  %486 = vmatpush1.msra.mxu0 0.0
  %487 = vmatprep.subr.mxu0 0.0
  %488 = vmatpush1.msra.mxu0 0.0
  %489 = vmatprep.subr.mxu0 0.0
  %490 = vmatpush1.msra.mxu0 0.0
  %491 = vmatprep.subr.mxu0 0.0
  %492 = vmatpush1.msra.mxu0 0.0
  %493 = vmatprep.subr.mxu0 0.0
  %494 = vmatpush1.msra.mxu0 0.0
  %495 = vmatprep.subr.mxu0 0.0
  %496 = vmatpush1.msra.mxu0 0.0
  %497 = vmatprep.subr.mxu0 0.0
  %498 = vmatpush1.msra.mxu0 0.0
  %499 = vmatprep.subr.mxu0 0.0
  %500 = vmatpush1.msra.mxu0 0.0
  %501 = vmatprep.mubr.f32.mxu0 0.0
  %502 = vmatmul.mubr.f32.gmra.mrb[0].mxu0 %v435
  %v503 = vpop.f32.mrb[0].mxu0
  %v504 = vadd.f32 0.0, %v503
  %v505 = vpop.f32.mrb[0].mxu0
  %506 = vdwg.mxu0
  %v507 = vadd.f32 %v434, %v504
  %v508 = vxor.u32 %v507, 2147483648
  %v509 = vmul.f32 %v508, 1.442695
  %v510 = vpow.pop %v509
  %v511 = vadd.f32 %v510, 1.0
  %v512 = vrcp.pop %v511
  %v513 = vmul.f32 1.0, %v512
  %v514 = vtanh.pop %v507
  %v515 = vmul.f32 %v513, %v420
  %517 = vrot.lane.b32.xlu0 %v514, 32
  %v518 = vpop.permute.xlu0 %517
  %v520 = vmul.f32 %v513, %v518
  %522 = vrot.lane.b32.xlu0 %v520, 32
  %v523 = vpop.permute.xlu0 %522
  %v525 = vadd.f32 %v515, %v523
  %v526 = vtanh.pop %v525
  %528 = vrot.lane.b32.xlu0 %v526, 32
  %v529 = vpop.permute.xlu0 %528
  %v531 = vmul.f32 %v513, %v529
  %533 = vrot.lane.b32.xlu0 %v531, 64
  %v534 = vpop.permute.xlu0 %533
  %s536 = scalar_lea.vmem [#allocation3], 24
  %537 = vst.msk [vmem:[%s536] sm:$0xff] %vm55, %v534
  %s538 = scalar_lea.vmem [#allocation2], 32
  %v539 = vld [vmem:[%s538] sm:$0xff]
  %v540 = vsel %vm55, %v534, 0
  %542 = vmatprep.subr.mxu0 0.0
  %543 = vmatpush1.msra.mxu0 %v32
  %544 = vmatprep.subr.mxu0 0.0
  %545 = vmatpush1.msra.mxu0 %v33
  %546 = vmatprep.subr.mxu0 0.0
  %547 = vmatpush1.msra.mxu0 %v34
  %548 = vmatprep.subr.mxu0 0.0
  %549 = vmatpush1.msra.mxu0 %v35
  %550 = vmatprep.subr.mxu0 0.0
  %551 = vmatpush1.msra.mxu0 0.0
  %552 = vmatprep.subr.mxu0 0.0
  %553 = vmatpush1.msra.mxu0 0.0
  %554 = vmatprep.subr.mxu0 0.0
  %555 = vmatpush1.msra.mxu0 0.0
  %556 = vmatprep.subr.mxu0 0.0
  %557 = vmatpush1.msra.mxu0 0.0
  %558 = vmatprep.subr.mxu0 0.0
  %559 = vmatpush1.msra.mxu0 0.0
  %560 = vmatprep.subr.mxu0 0.0
  %561 = vmatpush1.msra.mxu0 0.0
  %562 = vmatprep.subr.mxu0 0.0
  %563 = vmatpush1.msra.mxu0 0.0
  %564 = vmatprep.subr.mxu0 0.0
  %565 = vmatpush1.msra.mxu0 0.0
  %566 = vmatprep.subr.mxu0 0.0
  %567 = vmatpush1.msra.mxu0 0.0
  %568 = vmatprep.subr.mxu0 0.0
  %569 = vmatpush1.msra.mxu0 0.0
  %570 = vmatprep.subr.mxu0 0.0
  %571 = vmatpush1.msra.mxu0 0.0
  %572 = vmatprep.subr.mxu0 0.0
  %573 = vmatpush1.msra.mxu0 0.0
  %574 = vmatprep.subr.mxu0 0.0
  %575 = vmatpush1.msra.mxu0 0.0
  %576 = vmatprep.subr.mxu0 0.0
  %577 = vmatpush1.msra.mxu0 0.0
  %578 = vmatprep.subr.mxu0 0.0
  %579 = vmatpush1.msra.mxu0 0.0
  %580 = vmatprep.subr.mxu0 0.0
  %581 = vmatpush1.msra.mxu0 0.0
  %582 = vmatprep.subr.mxu0 0.0
  %583 = vmatpush1.msra.mxu0 0.0
  %584 = vmatprep.subr.mxu0 0.0
  %585 = vmatpush1.msra.mxu0 0.0
  %586 = vmatprep.subr.mxu0 0.0
  %587 = vmatpush1.msra.mxu0 0.0
  %588 = vmatprep.subr.mxu0 0.0
  %589 = vmatpush1.msra.mxu0 0.0
  %590 = vmatprep.subr.mxu0 0.0
  %591 = vmatpush1.msra.mxu0 0.0
  %592 = vmatprep.subr.mxu0 0.0
  %593 = vmatpush1.msra.mxu0 0.0
  %594 = vmatprep.subr.mxu0 0.0
  %595 = vmatpush1.msra.mxu0 0.0
  %596 = vmatprep.subr.mxu0 0.0
  %597 = vmatpush1.msra.mxu0 0.0
  %598 = vmatprep.subr.mxu0 0.0
  %599 = vmatpush1.msra.mxu0 0.0
  %600 = vmatprep.subr.mxu0 0.0
  %601 = vmatpush1.msra.mxu0 0.0
  %602 = vmatprep.subr.mxu0 0.0
  %603 = vmatpush1.msra.mxu0 0.0
  %604 = vmatprep.subr.mxu0 0.0
  %605 = vmatpush1.msra.mxu0 0.0
  %606 = vmatprep.mubr.f32.mxu0 0.0
  %607 = vmatmul.mubr.f32.gmra.mrb[0].mxu0 %v540
  %v608 = vpop.f32.mrb[0].mxu0
  %v609 = vadd.f32 0.0, %v608
  %v610 = vpop.f32.mrb[0].mxu0
  %611 = vdwg.mxu0
  %v612 = vadd.f32 %v539, %v609
  %v613 = vxor.u32 %v612, 2147483648
  %v614 = vmul.f32 %v613, 1.442695
  %v615 = vpow.pop %v614
  %v616 = vadd.f32 %v615, 1.0
  %v617 = vrcp.pop %v616
  %v618 = vmul.f32 1.0, %v617
  %v619 = vtanh.pop %v612
  %v620 = vmul.f32 %v618, %v525
  %622 = vrot.lane.b32.xlu0 %v619, 32
  %v623 = vpop.permute.xlu0 %622
  %v625 = vmul.f32 %v618, %v623
  %627 = vrot.lane.b32.xlu0 %v625, 32
  %v628 = vpop.permute.xlu0 %627
  %v630 = vadd.f32 %v620, %v628
  %v631 = vtanh.pop %v630
  %633 = vrot.lane.b32.xlu0 %v631, 32
  %v634 = vpop.permute.xlu0 %633
  %v636 = vmul.f32 %v618, %v634
  %638 = vrot.lane.b32.xlu0 %v636, 64
  %v639 = vpop.permute.xlu0 %638
  %s641 = scalar_lea.vmem [#allocation3], 32
  %642 = vst.msk [vmem:[%s641] sm:$0xff] %vm55, %v639
  %s643 = scalar_lea.vmem [#allocation2], 40
  %v644 = vld [vmem:[%s643] sm:$0xff]
  %v645 = vsel %vm55, %v639, 0
  %647 = vmatprep.subr.mxu0 0.0
  %648 = vmatpush1.msra.mxu0 %v32
  %649 = vmatprep.subr.mxu0 0.0
  %650 = vmatpush1.msra.mxu0 %v33
  %651 = vmatprep.subr.mxu0 0.0
  %652 = vmatpush1.msra.mxu0 %v34
  %653 = vmatprep.subr.mxu0 0.0
  %654 = vmatpush1.msra.mxu0 %v35
  %655 = vmatprep.subr.mxu0 0.0
  %656 = vmatpush1.msra.mxu0 0.0
  %657 = vmatprep.subr.mxu0 0.0
  %658 = vmatpush1.msra.mxu0 0.0
  %659 = vmatprep.subr.mxu0 0.0
  %660 = vmatpush1.msra.mxu0 0.0
  %661 = vmatprep.subr.mxu0 0.0
  %662 = vmatpush1.msra.mxu0 0.0
  %663 = vmatprep.subr.mxu0 0.0
  %664 = vmatpush1.msra.mxu0 0.0
  %665 = vmatprep.subr.mxu0 0.0
  %666 = vmatpush1.msra.mxu0 0.0
  %667 = vmatprep.subr.mxu0 0.0
  %668 = vmatpush1.msra.mxu0 0.0
  %669 = vmatprep.subr.mxu0 0.0
  %670 = vmatpush1.msra.mxu0 0.0
  %671 = vmatprep.subr.mxu0 0.0
  %672 = vmatpush1.msra.mxu0 0.0
  %673 = vmatprep.subr.mxu0 0.0
  %674 = vmatpush1.msra.mxu0 0.0
  %675 = vmatprep.subr.mxu0 0.0
  %676 = vmatpush1.msra.mxu0 0.0
  %677 = vmatprep.subr.mxu0 0.0
  %678 = vmatpush1.msra.mxu0 0.0
  %679 = vmatprep.subr.mxu0 0.0
  %680 = vmatpush1.msra.mxu0 0.0
  %681 = vmatprep.subr.mxu0 0.0
  %682 = vmatpush1.msra.mxu0 0.0
  %683 = vmatprep.subr.mxu0 0.0
  %684 = vmatpush1.msra.mxu0 0.0
  %685 = vmatprep.subr.mxu0 0.0
  %686 = vmatpush1.msra.mxu0 0.0
  %687 = vmatprep.subr.mxu0 0.0
  %688 = vmatpush1.msra.mxu0 0.0
  %689 = vmatprep.subr.mxu0 0.0
  %690 = vmatpush1.msra.mxu0 0.0
  %691 = vmatprep.subr.mxu0 0.0
  %692 = vmatpush1.msra.mxu0 0.0
  %693 = vmatprep.subr.mxu0 0.0
  %694 = vmatpush1.msra.mxu0 0.0
  %695 = vmatprep.subr.mxu0 0.0
  %696 = vmatpush1.msra.mxu0 0.0
  %697 = vmatprep.subr.mxu0 0.0
  %698 = vmatpush1.msra.mxu0 0.0
  %699 = vmatprep.subr.mxu0 0.0
  %700 = vmatpush1.msra.mxu0 0.0
  %701 = vmatprep.subr.mxu0 0.0
  %702 = vmatpush1.msra.mxu0 0.0
  %703 = vmatprep.subr.mxu0 0.0
  %704 = vmatpush1.msra.mxu0 0.0
  %705 = vmatprep.subr.mxu0 0.0
  %706 = vmatpush1.msra.mxu0 0.0
  %707 = vmatprep.subr.mxu0 0.0
  %708 = vmatpush1.msra.mxu0 0.0
  %709 = vmatprep.subr.mxu0 0.0
  %710 = vmatpush1.msra.mxu0 0.0
  %711 = vmatprep.mubr.f32.mxu0 0.0
  %712 = vmatmul.mubr.f32.gmra.mrb[0].mxu0 %v645
  %v713 = vpop.f32.mrb[0].mxu0
  %v714 = vadd.f32 0.0, %v713
  %v715 = vpop.f32.mrb[0].mxu0
  %716 = vdwg.mxu0
  %v717 = vadd.f32 %v644, %v714
  %v718 = vxor.u32 %v717, 2147483648
  %v719 = vmul.f32 %v718, 1.442695
  %v720 = vpow.pop %v719
  %v721 = vadd.f32 %v720, 1.0
  %v722 = vrcp.pop %v721
  %v723 = vmul.f32 1.0, %v722
  %v724 = vtanh.pop %v717
  %v725 = vmul.f32 %v723, %v630
  %727 = vrot.lane.b32.xlu0 %v724, 32
  %v728 = vpop.permute.xlu0 %727
  %v730 = vmul.f32 %v723, %v728
  %732 = vrot.lane.b32.xlu0 %v730, 32
  %v733 = vpop.permute.xlu0 %732
  %v735 = vadd.f32 %v725, %v733
  %v736 = vtanh.pop %v735
  %738 = vrot.lane.b32.xlu0 %v736, 32
  %v739 = vpop.permute.xlu0 %738
  %v741 = vmul.f32 %v723, %v739
  %743 = vrot.lane.b32.xlu0 %v741, 64
  %v744 = vpop.permute.xlu0 %743
  %s746 = scalar_lea.vmem [#allocation3], 40
  %747 = vst.msk [vmem:[%s746] sm:$0xff] %vm55, %v744
  %s748 = scalar_lea.vmem [#allocation2], 48
  %v749 = vld [vmem:[%s748] sm:$0xff]
  %v750 = vsel %vm55, %v744, 0
  %752 = vmatprep.subr.mxu0 0.0
  %753 = vmatpush1.msra.mxu0 %v32
  %754 = vmatprep.subr.mxu0 0.0
  %755 = vmatpush1.msra.mxu0 %v33
  %756 = vmatprep.subr.mxu0 0.0
  %757 = vmatpush1.msra.mxu0 %v34
  %758 = vmatprep.subr.mxu0 0.0
  %759 = vmatpush1.msra.mxu0 %v35
  %760 = vmatprep.subr.mxu0 0.0
  %761 = vmatpush1.msra.mxu0 0.0
  %762 = vmatprep.subr.mxu0 0.0
  %763 = vmatpush1.msra.mxu0 0.0
  %764 = vmatprep.subr.mxu0 0.0
  %765 = vmatpush1.msra.mxu0 0.0
  %766 = vmatprep.subr.mxu0 0.0
  %767 = vmatpush1.msra.mxu0 0.0
  %768 = vmatprep.subr.mxu0 0.0
  %769 = vmatpush1.msra.mxu0 0.0
  %770 = vmatprep.subr.mxu0 0.0
  %771 = vmatpush1.msra.mxu0 0.0
  %772 = vmatprep.subr.mxu0 0.0
  %773 = vmatpush1.msra.mxu0 0.0
  %774 = vmatprep.subr.mxu0 0.0
  %775 = vmatpush1.msra.mxu0 0.0
  %776 = vmatprep.subr.mxu0 0.0
  %777 = vmatpush1.msra.mxu0 0.0
  %778 = vmatprep.subr.mxu0 0.0
  %779 = vmatpush1.msra.mxu0 0.0
  %780 = vmatprep.subr.mxu0 0.0
  %781 = vmatpush1.msra.mxu0 0.0
  %782 = vmatprep.subr.mxu0 0.0
  %783 = vmatpush1.msra.mxu0 0.0
  %784 = vmatprep.subr.mxu0 0.0
  %785 = vmatpush1.msra.mxu0 0.0
  %786 = vmatprep.subr.mxu0 0.0
  %787 = vmatpush1.msra.mxu0 0.0
  %788 = vmatprep.subr.mxu0 0.0
  %789 = vmatpush1.msra.mxu0 0.0
  %790 = vmatprep.subr.mxu0 0.0
  %791 = vmatpush1.msra.mxu0 0.0
  %792 = vmatprep.subr.mxu0 0.0
  %793 = vmatpush1.msra.mxu0 0.0
  %794 = vmatprep.subr.mxu0 0.0
  %795 = vmatpush1.msra.mxu0 0.0
  %796 = vmatprep.subr.mxu0 0.0
  %797 = vmatpush1.msra.mxu0 0.0
  %798 = vmatprep.subr.mxu0 0.0
  %799 = vmatpush1.msra.mxu0 0.0
  %800 = vmatprep.subr.mxu0 0.0
  %801 = vmatpush1.msra.mxu0 0.0
  %802 = vmatprep.subr.mxu0 0.0
  %803 = vmatpush1.msra.mxu0 0.0
  %804 = vmatprep.subr.mxu0 0.0
  %805 = vmatpush1.msra.mxu0 0.0
  %806 = vmatprep.subr.mxu0 0.0
  %807 = vmatpush1.msra.mxu0 0.0
  %808 = vmatprep.subr.mxu0 0.0
  %809 = vmatpush1.msra.mxu0 0.0
  %810 = vmatprep.subr.mxu0 0.0
  %811 = vmatpush1.msra.mxu0 0.0
  %812 = vmatprep.subr.mxu0 0.0
  %813 = vmatpush1.msra.mxu0 0.0
  %814 = vmatprep.subr.mxu0 0.0
  %815 = vmatpush1.msra.mxu0 0.0
  %816 = vmatprep.mubr.f32.mxu0 0.0
  %817 = vmatmul.mubr.f32.gmra.mrb[0].mxu0 %v750
  %v818 = vpop.f32.mrb[0].mxu0
  %v819 = vadd.f32 0.0, %v818
  %v820 = vpop.f32.mrb[0].mxu0
  %821 = vdwg.mxu0
  %v822 = vadd.f32 %v749, %v819
  %v823 = vxor.u32 %v822, 2147483648
  %v824 = vmul.f32 %v823, 1.442695
  %v825 = vpow.pop %v824
  %v826 = vadd.f32 %v825, 1.0
  %v827 = vrcp.pop %v826
  %v828 = vmul.f32 1.0, %v827
  %v829 = vtanh.pop %v822
  %v830 = vmul.f32 %v828, %v735
  %832 = vrot.lane.b32.xlu0 %v829, 32
  %v833 = vpop.permute.xlu0 %832
  %v835 = vmul.f32 %v828, %v833
  %837 = vrot.lane.b32.xlu0 %v835, 32
  %v838 = vpop.permute.xlu0 %837
  %v840 = vadd.f32 %v830, %v838
  %v841 = vtanh.pop %v840
  %843 = vrot.lane.b32.xlu0 %v841, 32
  %v844 = vpop.permute.xlu0 %843
  %v846 = vmul.f32 %v828, %v844
  %848 = vrot.lane.b32.xlu0 %v846, 64
  %v849 = vpop.permute.xlu0 %848
  %s851 = scalar_lea.vmem [#allocation3], 48
  %852 = vst.msk [vmem:[%s851] sm:$0xff] %vm55, %v849
  %s853 = scalar_lea.vmem [#allocation2], 56
  %v854 = vld [vmem:[%s853] sm:$0xff]
  %v855 = vsel %vm55, %v849, 0
  %857 = vmatprep.subr.mxu0 0.0
  %858 = vmatpush1.msra.mxu0 %v32
  %859 = vmatprep.subr.mxu0 0.0
  %860 = vmatpush1.msra.mxu0 %v33
  %861 = vmatprep.subr.mxu0 0.0
  %862 = vmatpush1.msra.mxu0 %v34
  %863 = vmatprep.subr.mxu0 0.0
  %864 = vmatpush1.msra.mxu0 %v35
  %865 = vmatprep.subr.mxu0 0.0
  %866 = vmatpush1.msra.mxu0 0.0
  %867 = vmatprep.subr.mxu0 0.0
  %868 = vmatpush1.msra.mxu0 0.0
  %869 = vmatprep.subr.mxu0 0.0
  %870 = vmatpush1.msra.mxu0 0.0
  %871 = vmatprep.subr.mxu0 0.0
  %872 = vmatpush1.msra.mxu0 0.0
  %873 = vmatprep.subr.mxu0 0.0
  %874 = vmatpush1.msra.mxu0 0.0
  %875 = vmatprep.subr.mxu0 0.0
  %876 = vmatpush1.msra.mxu0 0.0
  %877 = vmatprep.subr.mxu0 0.0
  %878 = vmatpush1.msra.mxu0 0.0
  %879 = vmatprep.subr.mxu0 0.0
  %880 = vmatpush1.msra.mxu0 0.0
  %881 = vmatprep.subr.mxu0 0.0
  %882 = vmatpush1.msra.mxu0 0.0
  %883 = vmatprep.subr.mxu0 0.0
  %884 = vmatpush1.msra.mxu0 0.0
  %885 = vmatprep.subr.mxu0 0.0
  %886 = vmatpush1.msra.mxu0 0.0
  %887 = vmatprep.subr.mxu0 0.0
  %888 = vmatpush1.msra.mxu0 0.0
  %889 = vmatprep.subr.mxu0 0.0
  %890 = vmatpush1.msra.mxu0 0.0
  %891 = vmatprep.subr.mxu0 0.0
  %892 = vmatpush1.msra.mxu0 0.0
  %893 = vmatprep.subr.mxu0 0.0
  %894 = vmatpush1.msra.mxu0 0.0
  %895 = vmatprep.subr.mxu0 0.0
  %896 = vmatpush1.msra.mxu0 0.0
  %897 = vmatprep.subr.mxu0 0.0
  %898 = vmatpush1.msra.mxu0 0.0
  %899 = vmatprep.subr.mxu0 0.0
  %900 = vmatpush1.msra.mxu0 0.0
  %901 = vmatprep.subr.mxu0 0.0
  %902 = vmatpush1.msra.mxu0 0.0
  %903 = vmatprep.subr.mxu0 0.0
  %904 = vmatpush1.msra.mxu0 0.0
  %905 = vmatprep.subr.mxu0 0.0
  %906 = vmatpush1.msra.mxu0 0.0
  %907 = vmatprep.subr.mxu0 0.0
  %908 = vmatpush1.msra.mxu0 0.0
  %909 = vmatprep.subr.mxu0 0.0
  %910 = vmatpush1.msra.mxu0 0.0
  %911 = vmatprep.subr.mxu0 0.0
  %912 = vmatpush1.msra.mxu0 0.0
  %913 = vmatprep.subr.mxu0 0.0
  %914 = vmatpush1.msra.mxu0 0.0
  %915 = vmatprep.subr.mxu0 0.0
  %916 = vmatpush1.msra.mxu0 0.0
  %917 = vmatprep.subr.mxu0 0.0
  %918 = vmatpush1.msra.mxu0 0.0
  %919 = vmatprep.subr.mxu0 0.0
  %920 = vmatpush1.msra.mxu0 0.0
  %921 = vmatprep.mubr.f32.mxu0 0.0
  %922 = vmatmul.mubr.f32.gmra.mrb[0].mxu0 %v855
  %v923 = vpop.f32.mrb[0].mxu0
  %v924 = vadd.f32 0.0, %v923
  %v925 = vpop.f32.mrb[0].mxu0
  %926 = vdwg.mxu0
  %v927 = vadd.f32 %v854, %v924
  %v928 = vxor.u32 %v927, 2147483648
  %v929 = vmul.f32 %v928, 1.442695
  %v930 = vpow.pop %v929
  %v931 = vadd.f32 %v930, 1.0
  %v932 = vrcp.pop %v931
  %v933 = vmul.f32 1.0, %v932
  %v934 = vtanh.pop %v927
  %v935 = vmul.f32 %v933, %v840
  %937 = vrot.lane.b32.xlu0 %v934, 32
  %v938 = vpop.permute.xlu0 %937
  %v940 = vmul.f32 %v933, %v938
  %942 = vrot.lane.b32.xlu0 %v940, 32
  %v943 = vpop.permute.xlu0 %942
  %v945 = vadd.f32 %v935, %v943
  %v946 = vtanh.pop %v945
  %948 = vrot.lane.b32.xlu0 %v946, 32
  %v949 = vpop.permute.xlu0 %948
  %v951 = vmul.f32 %v933, %v949
  %953 = vrot.lane.b32.xlu0 %v951, 64
  %v954 = vpop.permute.xlu0 %953
  %s956 = scalar_lea.vmem [#allocation3], 56
  %957 = vst.msk [vmem:[%s956] sm:$0xff] %vm55, %v954
  %v958 = vld [vmem:[%s5] sm:$0xff]
  %v959 = vld [vmem:[%s5 + $0x8] sm:$0xff]
  %v960 = vld [vmem:[%s5 + $0x10] sm:$0xff]
  %v961 = vld [vmem:[%s5 + $0x18] sm:$0xff]
  %v962 = vld [vmem:[%s6] sm:$0x1]
  %v963 = vld [vmem:[#allocation3] sm:$0xff]
  %v964 = vld [vmem:[#allocation3 + $0x8] sm:$0xff]
  %v965 = vld [vmem:[#allocation3 + $0x10] sm:$0xff]
  %v966 = vld [vmem:[#allocation3 + $0x18] sm:$0xff]
  %v967 = vld [vmem:[#allocation3 + $0x20] sm:$0xff]
  %v968 = vld [vmem:[#allocation3 + $0x28] sm:$0xff]
  %v969 = vld [vmem:[#allocation3 + $0x30] sm:$0xff]
  %v970 = vld [vmem:[#allocation3 + $0x38] sm:$0xff]
  %v971 = vld [vmem:[%s4] sm:$0xff]
  %v972 = vld [vmem:[%s4 + $0x8] sm:$0xff]
  %v973 = vld [vmem:[%s4 + $0x10] sm:$0xff]
  %v974 = vld [vmem:[%s4 + $0x18] sm:$0xff]
  %v976 = vlaneseq
  %v977 = vshrl.u32 %v976, 7
  %v978 = vsub.s32 0, %v977
  %v979 = vrot.slane %v962, %v978
  %v982 = vsel %vm55, %v963, 0
  %v985 = vsel %vm55, %v964, 0
  %v988 = vsel %vm55, %v965, 0
  %v991 = vsel %vm55, %v966, 0
  %v994 = vsel %vm55, %v967, 0
  %v997 = vsel %vm55, %v968, 0
  %v1000 = vsel %vm55, %v969, 0
  %v1003 = vsel %vm55, %v970, 0
  %1005 = vmatprep.subr.mxu0 0.0
  %1006 = vmatpush1.msra.mxu0 %v971
  %1007 = vmatprep.subr.mxu0 0.0
  %1008 = vmatpush1.msra.mxu0 %v972
  %1009 = vmatprep.subr.mxu0 0.0
  %1010 = vmatpush1.msra.mxu0 %v973
  %1011 = vmatprep.subr.mxu0 0.0
  %1012 = vmatpush1.msra.mxu0 %v974
  %1013 = vmatprep.subr.mxu0 0.0
  %1014 = vmatpush1.msra.mxu0 0.0
  %1015 = vmatprep.subr.mxu0 0.0
  %1016 = vmatpush1.msra.mxu0 0.0
  %1017 = vmatprep.subr.mxu0 0.0
  %1018 = vmatpush1.msra.mxu0 0.0
  %1019 = vmatprep.subr.mxu0 0.0
  %1020 = vmatpush1.msra.mxu0 0.0
  %1021 = vmatprep.subr.mxu0 0.0
  %1022 = vmatpush1.msra.mxu0 0.0
  %1023 = vmatprep.subr.mxu0 0.0
  %1024 = vmatpush1.msra.mxu0 0.0
  %1025 = vmatprep.subr.mxu0 0.0
  %1026 = vmatpush1.msra.mxu0 0.0
  %1027 = vmatprep.subr.mxu0 0.0
  %1028 = vmatpush1.msra.mxu0 0.0
  %1029 = vmatprep.subr.mxu0 0.0
  %1030 = vmatpush1.msra.mxu0 0.0
  %1031 = vmatprep.subr.mxu0 0.0
  %1032 = vmatpush1.msra.mxu0 0.0
  %1033 = vmatprep.subr.mxu0 0.0
  %1034 = vmatpush1.msra.mxu0 0.0
  %1035 = vmatprep.subr.mxu0 0.0
  %1036 = vmatpush1.msra.mxu0 0.0
  %1037 = vmatprep.subr.mxu0 0.0
  %1038 = vmatpush1.msra.mxu0 0.0
  %1039 = vmatprep.subr.mxu0 0.0
  %1040 = vmatpush1.msra.mxu0 0.0
  %1041 = vmatprep.subr.mxu0 0.0
  %1042 = vmatpush1.msra.mxu0 0.0
  %1043 = vmatprep.subr.mxu0 0.0
  %1044 = vmatpush1.msra.mxu0 0.0
  %1045 = vmatprep.subr.mxu0 0.0
  %1046 = vmatpush1.msra.mxu0 0.0
  %1047 = vmatprep.subr.mxu0 0.0
  %1048 = vmatpush1.msra.mxu0 0.0
  %1049 = vmatprep.subr.mxu0 0.0
  %1050 = vmatpush1.msra.mxu0 0.0
  %1051 = vmatprep.subr.mxu0 0.0
  %1052 = vmatpush1.msra.mxu0 0.0
  %1053 = vmatprep.subr.mxu0 0.0
  %1054 = vmatpush1.msra.mxu0 0.0
  %1055 = vmatprep.subr.mxu0 0.0
  %1056 = vmatpush1.msra.mxu0 0.0
  %1057 = vmatprep.subr.mxu0 0.0
  %1058 = vmatpush1.msra.mxu0 0.0
  %1059 = vmatprep.subr.mxu0 0.0
  %1060 = vmatpush1.msra.mxu0 0.0
  %1061 = vmatprep.subr.mxu0 0.0
  %1062 = vmatpush1.msra.mxu0 0.0
  %1063 = vmatprep.subr.mxu0 0.0
  %1064 = vmatpush1.msra.mxu0 0.0
  %1065 = vmatprep.subr.mxu0 0.0
  %1066 = vmatpush1.msra.mxu0 0.0
  %1067 = vmatprep.subr.mxu0 0.0
  %1068 = vmatpush1.msra.mxu0 0.0
  %1069 = vmatprep.mubr.f32.mxu0 0.0
  %1070 = vmatmul.mubr.f32.gmra.mrb[0].mxu0 %v982
  %v1071 = vpop.f32.mrb[0].mxu0
  %v1072 = vadd.f32 %v979, %v1071
  %v1073 = vpop.f32.mrb[0].mxu0
  %1074 = vmatprep.mubr.f32.mxu0 0.0
  %1075 = vmatmul.mubr.f32.gmra.mrb[0].mxu0 %v985
  %v1076 = vpop.f32.mrb[0].mxu0
  %v1077 = vadd.f32 %v979, %v1076
  %v1078 = vpop.f32.mrb[0].mxu0
  %1079 = vmatprep.mubr.f32.mxu0 0.0
  %1080 = vmatmul.mubr.f32.gmra.mrb[0].mxu0 %v988
  %v1081 = vpop.f32.mrb[0].mxu0
  %v1082 = vadd.f32 %v979, %v1081
  %v1083 = vpop.f32.mrb[0].mxu0
  %1084 = vmatprep.mubr.f32.mxu0 0.0
  %1085 = vmatmul.mubr.f32.gmra.mrb[0].mxu0 %v991
  %v1086 = vpop.f32.mrb[0].mxu0
  %v1087 = vadd.f32 %v979, %v1086
  %v1088 = vpop.f32.mrb[0].mxu0
  %1089 = vmatprep.mubr.f32.mxu0 0.0
  %1090 = vmatmul.mubr.f32.gmra.mrb[0].mxu0 %v994
  %v1091 = vpop.f32.mrb[0].mxu0
  %v1092 = vadd.f32 %v979, %v1091
  %v1093 = vpop.f32.mrb[0].mxu0
  %1094 = vmatprep.mubr.f32.mxu0 0.0
  %1095 = vmatmul.mubr.f32.gmra.mrb[0].mxu0 %v997
  %v1096 = vpop.f32.mrb[0].mxu0
  %v1097 = vadd.f32 %v979, %v1096
  %v1098 = vpop.f32.mrb[0].mxu0
  %1099 = vmatprep.mubr.f32.mxu0 0.0
  %1100 = vmatmul.mubr.f32.gmra.mrb[0].mxu0 %v1000
  %v1101 = vpop.f32.mrb[0].mxu0
  %v1102 = vadd.f32 %v979, %v1101
  %v1103 = vpop.f32.mrb[0].mxu0
  %1104 = vmatprep.mubr.f32.mxu0 0.0
  %1105 = vmatmul.mubr.f32.gmra.mrb[0].mxu0 %v1003
  %v1106 = vpop.f32.mrb[0].mxu0
  %v1107 = vadd.f32 %v979, %v1106
  %v1108 = vpop.f32.mrb[0].mxu0
  %1109 = vdwg.mxu0
  %1110 = vst [vmem:[#allocation2] sm:$0xff] %v1072
  %1111 = vst [vmem:[#allocation2 + $0x8] sm:$0xff] %v1077
  %1112 = vst [vmem:[#allocation2 + $0x10] sm:$0xff] %v1082
  %1113 = vst [vmem:[#allocation2 + $0x18] sm:$0xff] %v1087
  %1114 = vst [vmem:[#allocation2 + $0x20] sm:$0xff] %v1092
  %1115 = vst [vmem:[#allocation2 + $0x28] sm:$0xff] %v1097
  %1116 = vst [vmem:[#allocation2 + $0x30] sm:$0xff] %v1102
  %1117 = vst [vmem:[#allocation2 + $0x38] sm:$0xff] %v1107
  %v1118 = vld [vmem:[#allocation2] sm:$0xff]
  %v1119 = vxor.u32 %v1118, 2147483648
  %v1120 = vmul.f32 %v1119, 1.442695
  %v1121 = vpow.pop %v1120
  %v1122 = vadd.f32 %v1121, 1.0
  %v1123 = vrcp.pop %v1122
  %v1124 = vmul.f32 1.0, %v1123
  %v1125 = vtanh.pop %v1118
  %v1126 = vmul.f32 %v1124, 0.0
  %1128 = vrot.lane.b32.xlu0 %v1125, 32
  %v1129 = vpop.permute.xlu0 %1128
  %v1131 = vmul.f32 %v1124, %v1129
  %1133 = vrot.lane.b32.xlu0 %v1131, 32
  %v1134 = vpop.permute.xlu0 %1133
  %v1136 = vadd.f32 %v1126, %v1134
  %v1137 = vtanh.pop %v1136
  %1139 = vrot.lane.b32.xlu0 %v1137, 32
  %v1140 = vpop.permute.xlu0 %1139
  %v1142 = vmul.f32 %v1124, %v1140
  %v1143 = vld [vmem:[%s223] sm:$0xff]
  %1145 = vrot.lane.b32.xlu0 %v1142, 64
  %v1146 = vpop.permute.xlu0 %1145
  %v1147 = vsel %vm55, %v1146, 0
  %1149 = vmatprep.subr.mxu0 0.0
  %1150 = vmatpush1.msra.mxu0 %v958
  %1151 = vmatprep.subr.mxu0 0.0
  %1152 = vmatpush1.msra.mxu0 %v959
  %1153 = vmatprep.subr.mxu0 0.0
  %1154 = vmatpush1.msra.mxu0 %v960
  %1155 = vmatprep.subr.mxu0 0.0
  %1156 = vmatpush1.msra.mxu0 %v961
  %1157 = vmatprep.subr.mxu0 0.0
  %1158 = vmatpush1.msra.mxu0 0.0
  %1159 = vmatprep.subr.mxu0 0.0
  %1160 = vmatpush1.msra.mxu0 0.0
  %1161 = vmatprep.subr.mxu0 0.0
  %1162 = vmatpush1.msra.mxu0 0.0
  %1163 = vmatprep.subr.mxu0 0.0
  %1164 = vmatpush1.msra.mxu0 0.0
  %1165 = vmatprep.subr.mxu0 0.0
  %1166 = vmatpush1.msra.mxu0 0.0
  %1167 = vmatprep.subr.mxu0 0.0
  %1168 = vmatpush1.msra.mxu0 0.0
  %1169 = vmatprep.subr.mxu0 0.0
  %1170 = vmatpush1.msra.mxu0 0.0
  %1171 = vmatprep.subr.mxu0 0.0
  %1172 = vmatpush1.msra.mxu0 0.0
  %1173 = vmatprep.subr.mxu0 0.0
  %1174 = vmatpush1.msra.mxu0 0.0
  %1175 = vmatprep.subr.mxu0 0.0
  %1176 = vmatpush1.msra.mxu0 0.0
  %1177 = vmatprep.subr.mxu0 0.0
  %1178 = vmatpush1.msra.mxu0 0.0
  %1179 = vmatprep.subr.mxu0 0.0
  %1180 = vmatpush1.msra.mxu0 0.0
  %1181 = vmatprep.subr.mxu0 0.0
  %1182 = vmatpush1.msra.mxu0 0.0
  %1183 = vmatprep.subr.mxu0 0.0
  %1184 = vmatpush1.msra.mxu0 0.0
  %1185 = vmatprep.subr.mxu0 0.0
  %1186 = vmatpush1.msra.mxu0 0.0
  %1187 = vmatprep.subr.mxu0 0.0
  %1188 = vmatpush1.msra.mxu0 0.0
  %1189 = vmatprep.subr.mxu0 0.0
  %1190 = vmatpush1.msra.mxu0 0.0
  %1191 = vmatprep.subr.mxu0 0.0
  %1192 = vmatpush1.msra.mxu0 0.0
  %1193 = vmatprep.subr.mxu0 0.0
  %1194 = vmatpush1.msra.mxu0 0.0
  %1195 = vmatprep.subr.mxu0 0.0
  %1196 = vmatpush1.msra.mxu0 0.0
  %1197 = vmatprep.subr.mxu0 0.0
  %1198 = vmatpush1.msra.mxu0 0.0
  %1199 = vmatprep.subr.mxu0 0.0
  %1200 = vmatpush1.msra.mxu0 0.0
  %1201 = vmatprep.subr.mxu0 0.0
  %1202 = vmatpush1.msra.mxu0 0.0
  %1203 = vmatprep.subr.mxu0 0.0
  %1204 = vmatpush1.msra.mxu0 0.0
  %1205 = vmatprep.subr.mxu0 0.0
  %1206 = vmatpush1.msra.mxu0 0.0
  %1207 = vmatprep.subr.mxu0 0.0
  %1208 = vmatpush1.msra.mxu0 0.0
  %1209 = vmatprep.subr.mxu0 0.0
  %1210 = vmatpush1.msra.mxu0 0.0
  %1211 = vmatprep.subr.mxu0 0.0
  %1212 = vmatpush1.msra.mxu0 0.0
  %1213 = vmatprep.mubr.f32.mxu0 0.0
  %1214 = vmatmul.mubr.f32.gmra.mrb[0].mxu0 %v1147
  %v1215 = vpop.f32.mrb[0].mxu0
  %v1216 = vadd.f32 0.0, %v1215
  %v1217 = vpop.f32.mrb[0].mxu0
  %1218 = vdwg.mxu0
  %v1219 = vadd.f32 %v1143, %v1216
  %v1220 = vxor.u32 %v1219, 2147483648
  %v1221 = vmul.f32 %v1220, 1.442695
  %v1222 = vpow.pop %v1221
  %v1223 = vadd.f32 %v1222, 1.0
  %v1224 = vrcp.pop %v1223
  %v1225 = vmul.f32 1.0, %v1224
  %v1226 = vtanh.pop %v1219
  %v1227 = vmul.f32 %v1225, %v1136
  %1229 = vrot.lane.b32.xlu0 %v1226, 32
  %v1230 = vpop.permute.xlu0 %1229
  %v1232 = vmul.f32 %v1225, %v1230
  %1234 = vrot.lane.b32.xlu0 %v1232, 32
  %v1235 = vpop.permute.xlu0 %1234
  %v1237 = vadd.f32 %v1227, %v1235
  %v1238 = vtanh.pop %v1237
  %1240 = vrot.lane.b32.xlu0 %v1238, 32
  %v1241 = vpop.permute.xlu0 %1240
  %v1243 = vmul.f32 %v1225, %v1241
  %v1244 = vld [vmem:[%s328] sm:$0xff]
  %1246 = vrot.lane.b32.xlu0 %v1243, 64
  %v1247 = vpop.permute.xlu0 %1246
  %v1248 = vsel %vm55, %v1247, 0
  %1250 = vmatprep.subr.mxu0 0.0
  %1251 = vmatpush1.msra.mxu0 %v958
  %1252 = vmatprep.subr.mxu0 0.0
  %1253 = vmatpush1.msra.mxu0 %v959
  %1254 = vmatprep.subr.mxu0 0.0
  %1255 = vmatpush1.msra.mxu0 %v960
  %1256 = vmatprep.subr.mxu0 0.0
  %1257 = vmatpush1.msra.mxu0 %v961
  %1258 = vmatprep.subr.mxu0 0.0
  %1259 = vmatpush1.msra.mxu0 0.0
  %1260 = vmatprep.subr.mxu0 0.0
  %1261 = vmatpush1.msra.mxu0 0.0
  %1262 = vmatprep.subr.mxu0 0.0
  %1263 = vmatpush1.msra.mxu0 0.0
  %1264 = vmatprep.subr.mxu0 0.0
  %1265 = vmatpush1.msra.mxu0 0.0
  %1266 = vmatprep.subr.mxu0 0.0
  %1267 = vmatpush1.msra.mxu0 0.0
  %1268 = vmatprep.subr.mxu0 0.0
  %1269 = vmatpush1.msra.mxu0 0.0
  %1270 = vmatprep.subr.mxu0 0.0
  %1271 = vmatpush1.msra.mxu0 0.0
  %1272 = vmatprep.subr.mxu0 0.0
  %1273 = vmatpush1.msra.mxu0 0.0
  %1274 = vmatprep.subr.mxu0 0.0
  %1275 = vmatpush1.msra.mxu0 0.0
  %1276 = vmatprep.subr.mxu0 0.0
  %1277 = vmatpush1.msra.mxu0 0.0
  %1278 = vmatprep.subr.mxu0 0.0
  %1279 = vmatpush1.msra.mxu0 0.0
  %1280 = vmatprep.subr.mxu0 0.0
  %1281 = vmatpush1.msra.mxu0 0.0
  %1282 = vmatprep.subr.mxu0 0.0
  %1283 = vmatpush1.msra.mxu0 0.0
  %1284 = vmatprep.subr.mxu0 0.0
  %1285 = vmatpush1.msra.mxu0 0.0
  %1286 = vmatprep.subr.mxu0 0.0
  %1287 = vmatpush1.msra.mxu0 0.0
  %1288 = vmatprep.subr.mxu0 0.0
  %1289 = vmatpush1.msra.mxu0 0.0
  %1290 = vmatprep.subr.mxu0 0.0
  %1291 = vmatpush1.msra.mxu0 0.0
  %1292 = vmatprep.subr.mxu0 0.0
  %1293 = vmatpush1.msra.mxu0 0.0
  %1294 = vmatprep.subr.mxu0 0.0
  %1295 = vmatpush1.msra.mxu0 0.0
  %1296 = vmatprep.subr.mxu0 0.0
  %1297 = vmatpush1.msra.mxu0 0.0
  %1298 = vmatprep.subr.mxu0 0.0
  %1299 = vmatpush1.msra.mxu0 0.0
  %1300 = vmatprep.subr.mxu0 0.0
  %1301 = vmatpush1.msra.mxu0 0.0
  %1302 = vmatprep.subr.mxu0 0.0
  %1303 = vmatpush1.msra.mxu0 0.0
  %1304 = vmatprep.subr.mxu0 0.0
  %1305 = vmatpush1.msra.mxu0 0.0
  %1306 = vmatprep.subr.mxu0 0.0
  %1307 = vmatpush1.msra.mxu0 0.0
  %1308 = vmatprep.subr.mxu0 0.0
  %1309 = vmatpush1.msra.mxu0 0.0
  %1310 = vmatprep.subr.mxu0 0.0
  %1311 = vmatpush1.msra.mxu0 0.0
  %1312 = vmatprep.subr.mxu0 0.0
  %1313 = vmatpush1.msra.mxu0 0.0
  %1314 = vmatprep.mubr.f32.mxu0 0.0
  %1315 = vmatmul.mubr.f32.gmra.mrb[0].mxu0 %v1248
  %v1316 = vpop.f32.mrb[0].mxu0
  %v1317 = vadd.f32 0.0, %v1316
  %v1318 = vpop.f32.mrb[0].mxu0
  %1319 = vdwg.mxu0
  %v1320 = vadd.f32 %v1244, %v1317
  %v1321 = vxor.u32 %v1320, 2147483648
  %v1322 = vmul.f32 %v1321, 1.442695
  %v1323 = vpow.pop %v1322
  %v1324 = vadd.f32 %v1323, 1.0
  %v1325 = vrcp.pop %v1324
  %v1326 = vmul.f32 1.0, %v1325
  %v1327 = vtanh.pop %v1320
  %v1328 = vmul.f32 %v1326, %v1237
  %1330 = vrot.lane.b32.xlu0 %v1327, 32
  %v1331 = vpop.permute.xlu0 %1330
  %v1333 = vmul.f32 %v1326, %v1331
  %1335 = vrot.lane.b32.xlu0 %v1333, 32
  %v1336 = vpop.permute.xlu0 %1335
  %v1338 = vadd.f32 %v1328, %v1336
  %v1339 = vtanh.pop %v1338
  %1341 = vrot.lane.b32.xlu0 %v1339, 32
  %v1342 = vpop.permute.xlu0 %1341
  %v1344 = vmul.f32 %v1326, %v1342
  %v1345 = vld [vmem:[%s433] sm:$0xff]
  %1347 = vrot.lane.b32.xlu0 %v1344, 64
  %v1348 = vpop.permute.xlu0 %1347
  %v1349 = vsel %vm55, %v1348, 0
  %1351 = vmatprep.subr.mxu0 0.0
  %1352 = vmatpush1.msra.mxu0 %v958
  %1353 = vmatprep.subr.mxu0 0.0
  %1354 = vmatpush1.msra.mxu0 %v959
  %1355 = vmatprep.subr.mxu0 0.0
  %1356 = vmatpush1.msra.mxu0 %v960
  %1357 = vmatprep.subr.mxu0 0.0
  %1358 = vmatpush1.msra.mxu0 %v961
  %1359 = vmatprep.subr.mxu0 0.0
  %1360 = vmatpush1.msra.mxu0 0.0
  %1361 = vmatprep.subr.mxu0 0.0
  %1362 = vmatpush1.msra.mxu0 0.0
  %1363 = vmatprep.subr.mxu0 0.0
  %1364 = vmatpush1.msra.mxu0 0.0
  %1365 = vmatprep.subr.mxu0 0.0
  %1366 = vmatpush1.msra.mxu0 0.0
  %1367 = vmatprep.subr.mxu0 0.0
  %1368 = vmatpush1.msra.mxu0 0.0
  %1369 = vmatprep.subr.mxu0 0.0
  %1370 = vmatpush1.msra.mxu0 0.0
  %1371 = vmatprep.subr.mxu0 0.0
  %1372 = vmatpush1.msra.mxu0 0.0
  %1373 = vmatprep.subr.mxu0 0.0
  %1374 = vmatpush1.msra.mxu0 0.0
  %1375 = vmatprep.subr.mxu0 0.0
  %1376 = vmatpush1.msra.mxu0 0.0
  %1377 = vmatprep.subr.mxu0 0.0
  %1378 = vmatpush1.msra.mxu0 0.0
  %1379 = vmatprep.subr.mxu0 0.0
  %1380 = vmatpush1.msra.mxu0 0.0
  %1381 = vmatprep.subr.mxu0 0.0
  %1382 = vmatpush1.msra.mxu0 0.0
  %1383 = vmatprep.subr.mxu0 0.0
  %1384 = vmatpush1.msra.mxu0 0.0
  %1385 = vmatprep.subr.mxu0 0.0
  %1386 = vmatpush1.msra.mxu0 0.0
  %1387 = vmatprep.subr.mxu0 0.0
  %1388 = vmatpush1.msra.mxu0 0.0
  %1389 = vmatprep.subr.mxu0 0.0
  %1390 = vmatpush1.msra.mxu0 0.0
  %1391 = vmatprep.subr.mxu0 0.0
  %1392 = vmatpush1.msra.mxu0 0.0
  %1393 = vmatprep.subr.mxu0 0.0
  %1394 = vmatpush1.msra.mxu0 0.0
  %1395 = vmatprep.subr.mxu0 0.0
  %1396 = vmatpush1.msra.mxu0 0.0
  %1397 = vmatprep.subr.mxu0 0.0
  %1398 = vmatpush1.msra.mxu0 0.0
  %1399 = vmatprep.subr.mxu0 0.0
  %1400 = vmatpush1.msra.mxu0 0.0
  %1401 = vmatprep.subr.mxu0 0.0
  %1402 = vmatpush1.msra.mxu0 0.0
  %1403 = vmatprep.subr.mxu0 0.0
  %1404 = vmatpush1.msra.mxu0 0.0
  %1405 = vmatprep.subr.mxu0 0.0
  %1406 = vmatpush1.msra.mxu0 0.0
  %1407 = vmatprep.subr.mxu0 0.0
  %1408 = vmatpush1.msra.mxu0 0.0
  %1409 = vmatprep.subr.mxu0 0.0
  %1410 = vmatpush1.msra.mxu0 0.0
  %1411 = vmatprep.subr.mxu0 0.0
  %1412 = vmatpush1.msra.mxu0 0.0
  %1413 = vmatprep.subr.mxu0 0.0
  %1414 = vmatpush1.msra.mxu0 0.0
  %1415 = vmatprep.mubr.f32.mxu0 0.0
  %1416 = vmatmul.mubr.f32.gmra.mrb[0].mxu0 %v1349
  %v1417 = vpop.f32.mrb[0].mxu0
  %v1418 = vadd.f32 0.0, %v1417
  %v1419 = vpop.f32.mrb[0].mxu0
  %1420 = vdwg.mxu0
  %v1421 = vadd.f32 %v1345, %v1418
  %v1422 = vxor.u32 %v1421, 2147483648
  %v1423 = vmul.f32 %v1422, 1.442695
  %v1424 = vpow.pop %v1423
  %v1425 = vadd.f32 %v1424, 1.0
  %v1426 = vrcp.pop %v1425
  %v1427 = vmul.f32 1.0, %v1426
  %v1428 = vtanh.pop %v1421
  %v1429 = vmul.f32 %v1427, %v1338
  %1431 = vrot.lane.b32.xlu0 %v1428, 32
  %v1432 = vpop.permute.xlu0 %1431
  %v1434 = vmul.f32 %v1427, %v1432
  %1436 = vrot.lane.b32.xlu0 %v1434, 32
  %v1437 = vpop.permute.xlu0 %1436
  %v1439 = vadd.f32 %v1429, %v1437
  %v1440 = vtanh.pop %v1439
  %1442 = vrot.lane.b32.xlu0 %v1440, 32
  %v1443 = vpop.permute.xlu0 %1442
  %v1445 = vmul.f32 %v1427, %v1443
  %v1446 = vld [vmem:[%s538] sm:$0xff]
  %1448 = vrot.lane.b32.xlu0 %v1445, 64
  %v1449 = vpop.permute.xlu0 %1448
  %v1450 = vsel %vm55, %v1449, 0
  %1452 = vmatprep.subr.mxu0 0.0
  %1453 = vmatpush1.msra.mxu0 %v958
  %1454 = vmatprep.subr.mxu0 0.0
  %1455 = vmatpush1.msra.mxu0 %v959
  %1456 = vmatprep.subr.mxu0 0.0
  %1457 = vmatpush1.msra.mxu0 %v960
  %1458 = vmatprep.subr.mxu0 0.0
  %1459 = vmatpush1.msra.mxu0 %v961
  %1460 = vmatprep.subr.mxu0 0.0
  %1461 = vmatpush1.msra.mxu0 0.0
  %1462 = vmatprep.subr.mxu0 0.0
  %1463 = vmatpush1.msra.mxu0 0.0
  %1464 = vmatprep.subr.mxu0 0.0
  %1465 = vmatpush1.msra.mxu0 0.0
  %1466 = vmatprep.subr.mxu0 0.0
  %1467 = vmatpush1.msra.mxu0 0.0
  %1468 = vmatprep.subr.mxu0 0.0
  %1469 = vmatpush1.msra.mxu0 0.0
  %1470 = vmatprep.subr.mxu0 0.0
  %1471 = vmatpush1.msra.mxu0 0.0
  %1472 = vmatprep.subr.mxu0 0.0
  %1473 = vmatpush1.msra.mxu0 0.0
  %1474 = vmatprep.subr.mxu0 0.0
  %1475 = vmatpush1.msra.mxu0 0.0
  %1476 = vmatprep.subr.mxu0 0.0
  %1477 = vmatpush1.msra.mxu0 0.0
  %1478 = vmatprep.subr.mxu0 0.0
  %1479 = vmatpush1.msra.mxu0 0.0
  %1480 = vmatprep.subr.mxu0 0.0
  %1481 = vmatpush1.msra.mxu0 0.0
  %1482 = vmatprep.subr.mxu0 0.0
  %1483 = vmatpush1.msra.mxu0 0.0
  %1484 = vmatprep.subr.mxu0 0.0
  %1485 = vmatpush1.msra.mxu0 0.0
  %1486 = vmatprep.subr.mxu0 0.0
  %1487 = vmatpush1.msra.mxu0 0.0
  %1488 = vmatprep.subr.mxu0 0.0
  %1489 = vmatpush1.msra.mxu0 0.0
  %1490 = vmatprep.subr.mxu0 0.0
  %1491 = vmatpush1.msra.mxu0 0.0
  %1492 = vmatprep.subr.mxu0 0.0
  %1493 = vmatpush1.msra.mxu0 0.0
  %1494 = vmatprep.subr.mxu0 0.0
  %1495 = vmatpush1.msra.mxu0 0.0
  %1496 = vmatprep.subr.mxu0 0.0
  %1497 = vmatpush1.msra.mxu0 0.0
  %1498 = vmatprep.subr.mxu0 0.0
  %1499 = vmatpush1.msra.mxu0 0.0
  %1500 = vmatprep.subr.mxu0 0.0
  %1501 = vmatpush1.msra.mxu0 0.0
  %1502 = vmatprep.subr.mxu0 0.0
  %1503 = vmatpush1.msra.mxu0 0.0
  %1504 = vmatprep.subr.mxu0 0.0
  %1505 = vmatpush1.msra.mxu0 0.0
  %1506 = vmatprep.subr.mxu0 0.0
  %1507 = vmatpush1.msra.mxu0 0.0
  %1508 = vmatprep.subr.mxu0 0.0
  %1509 = vmatpush1.msra.mxu0 0.0
  %1510 = vmatprep.subr.mxu0 0.0
  %1511 = vmatpush1.msra.mxu0 0.0
  %1512 = vmatprep.subr.mxu0 0.0
  %1513 = vmatpush1.msra.mxu0 0.0
  %1514 = vmatprep.subr.mxu0 0.0
  %1515 = vmatpush1.msra.mxu0 0.0
  %1516 = vmatprep.mubr.f32.mxu0 0.0
  %1517 = vmatmul.mubr.f32.gmra.mrb[0].mxu0 %v1450
  %v1518 = vpop.f32.mrb[0].mxu0
  %v1519 = vadd.f32 0.0, %v1518
  %v1520 = vpop.f32.mrb[0].mxu0
  %1521 = vdwg.mxu0
  %v1522 = vadd.f32 %v1446, %v1519
  %v1523 = vxor.u32 %v1522, 2147483648
  %v1524 = vmul.f32 %v1523, 1.442695
  %v1525 = vpow.pop %v1524
  %v1526 = vadd.f32 %v1525, 1.0
  %v1527 = vrcp.pop %v1526
  %v1528 = vmul.f32 1.0, %v1527
  %v1529 = vtanh.pop %v1522
  %v1530 = vmul.f32 %v1528, %v1439
  %1532 = vrot.lane.b32.xlu0 %v1529, 32
  %v1533 = vpop.permute.xlu0 %1532
  %v1535 = vmul.f32 %v1528, %v1533
  %1537 = vrot.lane.b32.xlu0 %v1535, 32
  %v1538 = vpop.permute.xlu0 %1537
  %v1540 = vadd.f32 %v1530, %v1538
  %v1541 = vtanh.pop %v1540
  %1543 = vrot.lane.b32.xlu0 %v1541, 32
  %v1544 = vpop.permute.xlu0 %1543
  %v1546 = vmul.f32 %v1528, %v1544
  %v1547 = vld [vmem:[%s643] sm:$0xff]
  %1549 = vrot.lane.b32.xlu0 %v1546, 64
  %v1550 = vpop.permute.xlu0 %1549
  %v1551 = vsel %vm55, %v1550, 0
  %1553 = vmatprep.subr.mxu0 0.0
  %1554 = vmatpush1.msra.mxu0 %v958
  %1555 = vmatprep.subr.mxu0 0.0
  %1556 = vmatpush1.msra.mxu0 %v959
  %1557 = vmatprep.subr.mxu0 0.0
  %1558 = vmatpush1.msra.mxu0 %v960
  %1559 = vmatprep.subr.mxu0 0.0
  %1560 = vmatpush1.msra.mxu0 %v961
  %1561 = vmatprep.subr.mxu0 0.0
  %1562 = vmatpush1.msra.mxu0 0.0
  %1563 = vmatprep.subr.mxu0 0.0
  %1564 = vmatpush1.msra.mxu0 0.0
  %1565 = vmatprep.subr.mxu0 0.0
  %1566 = vmatpush1.msra.mxu0 0.0
  %1567 = vmatprep.subr.mxu0 0.0
  %1568 = vmatpush1.msra.mxu0 0.0
  %1569 = vmatprep.subr.mxu0 0.0
  %1570 = vmatpush1.msra.mxu0 0.0
  %1571 = vmatprep.subr.mxu0 0.0
  %1572 = vmatpush1.msra.mxu0 0.0
  %1573 = vmatprep.subr.mxu0 0.0
  %1574 = vmatpush1.msra.mxu0 0.0
  %1575 = vmatprep.subr.mxu0 0.0
  %1576 = vmatpush1.msra.mxu0 0.0
  %1577 = vmatprep.subr.mxu0 0.0
  %1578 = vmatpush1.msra.mxu0 0.0
  %1579 = vmatprep.subr.mxu0 0.0
  %1580 = vmatpush1.msra.mxu0 0.0
  %1581 = vmatprep.subr.mxu0 0.0
  %1582 = vmatpush1.msra.mxu0 0.0
  %1583 = vmatprep.subr.mxu0 0.0
  %1584 = vmatpush1.msra.mxu0 0.0
  %1585 = vmatprep.subr.mxu0 0.0
  %1586 = vmatpush1.msra.mxu0 0.0
  %1587 = vmatprep.subr.mxu0 0.0
  %1588 = vmatpush1.msra.mxu0 0.0
  %1589 = vmatprep.subr.mxu0 0.0
  %1590 = vmatpush1.msra.mxu0 0.0
  %1591 = vmatprep.subr.mxu0 0.0
  %1592 = vmatpush1.msra.mxu0 0.0
  %1593 = vmatprep.subr.mxu0 0.0
  %1594 = vmatpush1.msra.mxu0 0.0
  %1595 = vmatprep.subr.mxu0 0.0
  %1596 = vmatpush1.msra.mxu0 0.0
  %1597 = vmatprep.subr.mxu0 0.0
  %1598 = vmatpush1.msra.mxu0 0.0
  %1599 = vmatprep.subr.mxu0 0.0
  %1600 = vmatpush1.msra.mxu0 0.0
  %1601 = vmatprep.subr.mxu0 0.0
  %1602 = vmatpush1.msra.mxu0 0.0
  %1603 = vmatprep.subr.mxu0 0.0
  %1604 = vmatpush1.msra.mxu0 0.0
  %1605 = vmatprep.subr.mxu0 0.0
  %1606 = vmatpush1.msra.mxu0 0.0
  %1607 = vmatprep.subr.mxu0 0.0
  %1608 = vmatpush1.msra.mxu0 0.0
  %1609 = vmatprep.subr.mxu0 0.0
  %1610 = vmatpush1.msra.mxu0 0.0
  %1611 = vmatprep.subr.mxu0 0.0
  %1612 = vmatpush1.msra.mxu0 0.0
  %1613 = vmatprep.subr.mxu0 0.0
  %1614 = vmatpush1.msra.mxu0 0.0
  %1615 = vmatprep.subr.mxu0 0.0
  %1616 = vmatpush1.msra.mxu0 0.0
  %1617 = vmatprep.mubr.f32.mxu0 0.0
  %1618 = vmatmul.mubr.f32.gmra.mrb[0].mxu0 %v1551
  %v1619 = vpop.f32.mrb[0].mxu0
  %v1620 = vadd.f32 0.0, %v1619
  %v1621 = vpop.f32.mrb[0].mxu0
  %1622 = vdwg.mxu0
  %v1623 = vadd.f32 %v1547, %v1620
  %v1624 = vxor.u32 %v1623, 2147483648
  %v1625 = vmul.f32 %v1624, 1.442695
  %v1626 = vpow.pop %v1625
  %v1627 = vadd.f32 %v1626, 1.0
  %v1628 = vrcp.pop %v1627
  %v1629 = vmul.f32 1.0, %v1628
  %v1630 = vtanh.pop %v1623
  %v1631 = vmul.f32 %v1629, %v1540
  %1633 = vrot.lane.b32.xlu0 %v1630, 32
  %v1634 = vpop.permute.xlu0 %1633
  %v1636 = vmul.f32 %v1629, %v1634
  %1638 = vrot.lane.b32.xlu0 %v1636, 32
  %v1639 = vpop.permute.xlu0 %1638
  %v1641 = vadd.f32 %v1631, %v1639
  %v1642 = vtanh.pop %v1641
  %1644 = vrot.lane.b32.xlu0 %v1642, 32
  %v1645 = vpop.permute.xlu0 %1644
  %v1647 = vmul.f32 %v1629, %v1645
  %v1648 = vld [vmem:[%s748] sm:$0xff]
  %1650 = vrot.lane.b32.xlu0 %v1647, 64
  %v1651 = vpop.permute.xlu0 %1650
  %v1652 = vsel %vm55, %v1651, 0
  %1654 = vmatprep.subr.mxu0 0.0
  %1655 = vmatpush1.msra.mxu0 %v958
  %1656 = vmatprep.subr.mxu0 0.0
  %1657 = vmatpush1.msra.mxu0 %v959
  %1658 = vmatprep.subr.mxu0 0.0
  %1659 = vmatpush1.msra.mxu0 %v960
  %1660 = vmatprep.subr.mxu0 0.0
  %1661 = vmatpush1.msra.mxu0 %v961
  %1662 = vmatprep.subr.mxu0 0.0
  %1663 = vmatpush1.msra.mxu0 0.0
  %1664 = vmatprep.subr.mxu0 0.0
  %1665 = vmatpush1.msra.mxu0 0.0
  %1666 = vmatprep.subr.mxu0 0.0
  %1667 = vmatpush1.msra.mxu0 0.0
  %1668 = vmatprep.subr.mxu0 0.0
  %1669 = vmatpush1.msra.mxu0 0.0
  %1670 = vmatprep.subr.mxu0 0.0
  %1671 = vmatpush1.msra.mxu0 0.0
  %1672 = vmatprep.subr.mxu0 0.0
  %1673 = vmatpush1.msra.mxu0 0.0
  %1674 = vmatprep.subr.mxu0 0.0
  %1675 = vmatpush1.msra.mxu0 0.0
  %1676 = vmatprep.subr.mxu0 0.0
  %1677 = vmatpush1.msra.mxu0 0.0
  %1678 = vmatprep.subr.mxu0 0.0
  %1679 = vmatpush1.msra.mxu0 0.0
  %1680 = vmatprep.subr.mxu0 0.0
  %1681 = vmatpush1.msra.mxu0 0.0
  %1682 = vmatprep.subr.mxu0 0.0
  %1683 = vmatpush1.msra.mxu0 0.0
  %1684 = vmatprep.subr.mxu0 0.0
  %1685 = vmatpush1.msra.mxu0 0.0
  %1686 = vmatprep.subr.mxu0 0.0
  %1687 = vmatpush1.msra.mxu0 0.0
  %1688 = vmatprep.subr.mxu0 0.0
  %1689 = vmatpush1.msra.mxu0 0.0
  %1690 = vmatprep.subr.mxu0 0.0
  %1691 = vmatpush1.msra.mxu0 0.0
  %1692 = vmatprep.subr.mxu0 0.0
  %1693 = vmatpush1.msra.mxu0 0.0
  %1694 = vmatprep.subr.mxu0 0.0
  %1695 = vmatpush1.msra.mxu0 0.0
  %1696 = vmatprep.subr.mxu0 0.0
  %1697 = vmatpush1.msra.mxu0 0.0
  %1698 = vmatprep.subr.mxu0 0.0
  %1699 = vmatpush1.msra.mxu0 0.0
  %1700 = vmatprep.subr.mxu0 0.0
  %1701 = vmatpush1.msra.mxu0 0.0
  %1702 = vmatprep.subr.mxu0 0.0
  %1703 = vmatpush1.msra.mxu0 0.0
  %1704 = vmatprep.subr.mxu0 0.0
  %1705 = vmatpush1.msra.mxu0 0.0
  %1706 = vmatprep.subr.mxu0 0.0
  %1707 = vmatpush1.msra.mxu0 0.0
  %1708 = vmatprep.subr.mxu0 0.0
  %1709 = vmatpush1.msra.mxu0 0.0
  %1710 = vmatprep.subr.mxu0 0.0
  %1711 = vmatpush1.msra.mxu0 0.0
  %1712 = vmatprep.subr.mxu0 0.0
  %1713 = vmatpush1.msra.mxu0 0.0
  %1714 = vmatprep.subr.mxu0 0.0
  %1715 = vmatpush1.msra.mxu0 0.0
  %1716 = vmatprep.subr.mxu0 0.0
  %1717 = vmatpush1.msra.mxu0 0.0
  %1718 = vmatprep.mubr.f32.mxu0 0.0
  %1719 = vmatmul.mubr.f32.gmra.mrb[0].mxu0 %v1652
  %v1720 = vpop.f32.mrb[0].mxu0
  %v1721 = vadd.f32 0.0, %v1720
  %v1722 = vpop.f32.mrb[0].mxu0
  %1723 = vdwg.mxu0
  %v1724 = vadd.f32 %v1648, %v1721
  %v1725 = vxor.u32 %v1724, 2147483648
  %v1726 = vmul.f32 %v1725, 1.442695
  %v1727 = vpow.pop %v1726
  %v1728 = vadd.f32 %v1727, 1.0
  %v1729 = vrcp.pop %v1728
  %v1730 = vmul.f32 1.0, %v1729
  %v1731 = vtanh.pop %v1724
  %v1732 = vmul.f32 %v1730, %v1641
  %1734 = vrot.lane.b32.xlu0 %v1731, 32
  %v1735 = vpop.permute.xlu0 %1734
  %v1737 = vmul.f32 %v1730, %v1735
  %1739 = vrot.lane.b32.xlu0 %v1737, 32
  %v1740 = vpop.permute.xlu0 %1739
  %v1742 = vadd.f32 %v1732, %v1740
  %v1743 = vtanh.pop %v1742
  %1745 = vrot.lane.b32.xlu0 %v1743, 32
  %v1746 = vpop.permute.xlu0 %1745
  %v1748 = vmul.f32 %v1730, %v1746
  %v1749 = vld [vmem:[%s853] sm:$0xff]
  %1751 = vrot.lane.b32.xlu0 %v1748, 64
  %v1752 = vpop.permute.xlu0 %1751
  %v1753 = vsel %vm55, %v1752, 0
  %1755 = vmatprep.subr.mxu0 0.0
  %1756 = vmatpush1.msra.mxu0 %v958
  %1757 = vmatprep.subr.mxu0 0.0
  %1758 = vmatpush1.msra.mxu0 %v959
  %1759 = vmatprep.subr.mxu0 0.0
  %1760 = vmatpush1.msra.mxu0 %v960
  %1761 = vmatprep.subr.mxu0 0.0
  %1762 = vmatpush1.msra.mxu0 %v961
  %1763 = vmatprep.subr.mxu0 0.0
  %1764 = vmatpush1.msra.mxu0 0.0
  %1765 = vmatprep.subr.mxu0 0.0
  %1766 = vmatpush1.msra.mxu0 0.0
  %1767 = vmatprep.subr.mxu0 0.0
  %1768 = vmatpush1.msra.mxu0 0.0
  %1769 = vmatprep.subr.mxu0 0.0
  %1770 = vmatpush1.msra.mxu0 0.0
  %1771 = vmatprep.subr.mxu0 0.0
  %1772 = vmatpush1.msra.mxu0 0.0
  %1773 = vmatprep.subr.mxu0 0.0
  %1774 = vmatpush1.msra.mxu0 0.0
  %1775 = vmatprep.subr.mxu0 0.0
  %1776 = vmatpush1.msra.mxu0 0.0
  %1777 = vmatprep.subr.mxu0 0.0
  %1778 = vmatpush1.msra.mxu0 0.0
  %1779 = vmatprep.subr.mxu0 0.0
  %1780 = vmatpush1.msra.mxu0 0.0
  %1781 = vmatprep.subr.mxu0 0.0
  %1782 = vmatpush1.msra.mxu0 0.0
  %1783 = vmatprep.subr.mxu0 0.0
  %1784 = vmatpush1.msra.mxu0 0.0
  %1785 = vmatprep.subr.mxu0 0.0
  %1786 = vmatpush1.msra.mxu0 0.0
  %1787 = vmatprep.subr.mxu0 0.0
  %1788 = vmatpush1.msra.mxu0 0.0
  %1789 = vmatprep.subr.mxu0 0.0
  %1790 = vmatpush1.msra.mxu0 0.0
  %1791 = vmatprep.subr.mxu0 0.0
  %1792 = vmatpush1.msra.mxu0 0.0
  %1793 = vmatprep.subr.mxu0 0.0
  %1794 = vmatpush1.msra.mxu0 0.0
  %1795 = vmatprep.subr.mxu0 0.0
  %1796 = vmatpush1.msra.mxu0 0.0
  %1797 = vmatprep.subr.mxu0 0.0
  %1798 = vmatpush1.msra.mxu0 0.0
  %1799 = vmatprep.subr.mxu0 0.0
  %1800 = vmatpush1.msra.mxu0 0.0
  %1801 = vmatprep.subr.mxu0 0.0
  %1802 = vmatpush1.msra.mxu0 0.0
  %1803 = vmatprep.subr.mxu0 0.0
  %1804 = vmatpush1.msra.mxu0 0.0
  %1805 = vmatprep.subr.mxu0 0.0
  %1806 = vmatpush1.msra.mxu0 0.0
  %1807 = vmatprep.subr.mxu0 0.0
  %1808 = vmatpush1.msra.mxu0 0.0
  %1809 = vmatprep.subr.mxu0 0.0
  %1810 = vmatpush1.msra.mxu0 0.0
  %1811 = vmatprep.subr.mxu0 0.0
  %1812 = vmatpush1.msra.mxu0 0.0
  %1813 = vmatprep.subr.mxu0 0.0
  %1814 = vmatpush1.msra.mxu0 0.0
  %1815 = vmatprep.subr.mxu0 0.0
  %1816 = vmatpush1.msra.mxu0 0.0
  %1817 = vmatprep.subr.mxu0 0.0
  %1818 = vmatpush1.msra.mxu0 0.0
  %1819 = vmatprep.mubr.f32.mxu0 0.0
  %1820 = vmatmul.mubr.f32.gmra.mrb[0].mxu0 %v1753
  %v1821 = vpop.f32.mrb[0].mxu0
  %v1822 = vadd.f32 0.0, %v1821
  %v1823 = vpop.f32.mrb[0].mxu0
  %1824 = vdwg.mxu0
  %v1825 = vadd.f32 %v1749, %v1822
  %v1826 = vxor.u32 %v1825, 2147483648
  %v1827 = vmul.f32 %v1826, 1.442695
  %v1828 = vpow.pop %v1827
  %v1829 = vadd.f32 %v1828, 1.0
  %v1830 = vrcp.pop %v1829
  %v1831 = vmul.f32 1.0, %v1830
  %v1832 = vtanh.pop %v1825
  %v1833 = vmul.f32 %v1831, %v1742
  %1835 = vrot.lane.b32.xlu0 %v1832, 32
  %v1836 = vpop.permute.xlu0 %1835
  %v1838 = vmul.f32 %v1831, %v1836
  %1840 = vrot.lane.b32.xlu0 %v1838, 32
  %v1841 = vpop.permute.xlu0 %1840
  %v1843 = vadd.f32 %v1833, %v1841
  %v1844 = vtanh.pop %v1843
  %1846 = vrot.lane.b32.xlu0 %v1844, 32
  %v1847 = vpop.permute.xlu0 %1846
  %v1849 = vmul.f32 %v1831, %v1847
  %v1850 = vld [vmem:[%s7] sm:$0xff]
  %v1851 = vld [vmem:[%s7 + $0x8] sm:$0xff]
  %v1852 = vld [vmem:[%s7 + $0x10] sm:$0xff]
  %v1853 = vld [vmem:[%s7 + $0x18] sm:$0xff]
  %v1854 = vld [vmem:[%s7 + $0x20] sm:$0xff]
  %v1855 = vld [vmem:[%s7 + $0x28] sm:$0xff]
  %v1856 = vld [vmem:[%s7 + $0x30] sm:$0xff]
  %v1857 = vld [vmem:[%s7 + $0x38] sm:$0xff]
  %1859 = vrot.lane.b32.xlu0 %v1849, 64
  %v1860 = vpop.permute.xlu0 %1859
  %v1861 = vsel %vm55, %v1860, 0
  %1863 = vmatprep.subr.mxu0 0.0
  %1864 = vmatpush1.msra.mxu0 %v1854
  %1865 = vmatprep.subr.mxu0 0.0
  %1866 = vmatpush1.msra.mxu0 %v1855
  %1867 = vmatprep.subr.mxu0 0.0
  %1868 = vmatpush1.msra.mxu0 %v1856
  %1869 = vmatprep.subr.mxu0 0.0
  %1870 = vmatpush1.msra.mxu0 %v1857
  %1871 = vmatprep.subr.mxu0 0.0
  %1872 = vmatpush1.msra.mxu0 0.0
  %1873 = vmatprep.subr.mxu0 0.0
  %1874 = vmatpush1.msra.mxu0 0.0
  %1875 = vmatprep.subr.mxu0 0.0
  %1876 = vmatpush1.msra.mxu0 0.0
  %1877 = vmatprep.subr.mxu0 0.0
  %1878 = vmatpush1.msra.mxu0 0.0
  %1879 = vmatprep.subr.mxu0 0.0
  %1880 = vmatpush1.msra.mxu0 0.0
  %1881 = vmatprep.subr.mxu0 0.0
  %1882 = vmatpush1.msra.mxu0 0.0
  %1883 = vmatprep.subr.mxu0 0.0
  %1884 = vmatpush1.msra.mxu0 0.0
  %1885 = vmatprep.subr.mxu0 0.0
  %1886 = vmatpush1.msra.mxu0 0.0
  %1887 = vmatprep.subr.mxu0 0.0
  %1888 = vmatpush1.msra.mxu0 0.0
  %1889 = vmatprep.subr.mxu0 0.0
  %1890 = vmatpush1.msra.mxu0 0.0
  %1891 = vmatprep.subr.mxu0 0.0
  %1892 = vmatpush1.msra.mxu0 0.0
  %1893 = vmatprep.subr.mxu0 0.0
  %1894 = vmatpush1.msra.mxu0 0.0
  %1895 = vmatprep.subr.mxu0 0.0
  %1896 = vmatpush1.msra.mxu0 0.0
  %1897 = vmatprep.subr.mxu0 0.0
  %1898 = vmatpush1.msra.mxu0 0.0
  %1899 = vmatprep.subr.mxu0 0.0
  %1900 = vmatpush1.msra.mxu0 0.0
  %1901 = vmatprep.subr.mxu0 0.0
  %1902 = vmatpush1.msra.mxu0 0.0
  %1903 = vmatprep.subr.mxu0 0.0
  %1904 = vmatpush1.msra.mxu0 0.0
  %1905 = vmatprep.subr.mxu0 0.0
  %1906 = vmatpush1.msra.mxu0 0.0
  %1907 = vmatprep.subr.mxu0 0.0
  %1908 = vmatpush1.msra.mxu0 0.0
  %1909 = vmatprep.subr.mxu0 0.0
  %1910 = vmatpush1.msra.mxu0 0.0
  %1911 = vmatprep.subr.mxu0 0.0
  %1912 = vmatpush1.msra.mxu0 0.0
  %1913 = vmatprep.subr.mxu0 0.0
  %1914 = vmatpush1.msra.mxu0 0.0
  %1915 = vmatprep.subr.mxu0 0.0
  %1916 = vmatpush1.msra.mxu0 0.0
  %1917 = vmatprep.subr.mxu0 0.0
  %1918 = vmatpush1.msra.mxu0 0.0
  %1919 = vmatprep.subr.mxu0 0.0
  %1920 = vmatpush1.msra.mxu0 0.0
  %1921 = vmatprep.subr.mxu0 0.0
  %1922 = vmatpush1.msra.mxu0 0.0
  %1923 = vmatprep.subr.mxu0 0.0
  %1924 = vmatpush1.msra.mxu0 0.0
  %1925 = vmatprep.subr.mxu0 0.0
  %1926 = vmatpush1.msra.mxu0 0.0
  %1927 = vmatprep.mubr.f32.mxu0 0.0
  %1928 = vmatmul.mubr.f32.gmra.mrb[0].mxu0 %v1861
  %v1929 = vpop.f32.mrb[0].mxu0
  %v1930 = vadd.f32 0.0, %v1929
  %v1931 = vpop.f32.mrb[0].mxu0
  %1932 = vdwg.mxu0
  %1933 = vmatprep.subr.mxu0 0.0
  %1934 = vmatpush1.msra.mxu0 %v1850
  %1935 = vmatprep.subr.mxu0 0.0
  %1936 = vmatpush1.msra.mxu0 %v1851
  %1937 = vmatprep.subr.mxu0 0.0
  %1938 = vmatpush1.msra.mxu0 %v1852
  %1939 = vmatprep.subr.mxu0 0.0
  %1940 = vmatpush1.msra.mxu0 %v1853
  %1941 = vmatprep.subr.mxu0 0.0
  %1942 = vmatpush1.msra.mxu0 0.0
  %1943 = vmatprep.subr.mxu0 0.0
  %1944 = vmatpush1.msra.mxu0 0.0
  %1945 = vmatprep.subr.mxu0 0.0
  %1946 = vmatpush1.msra.mxu0 0.0
  %1947 = vmatprep.subr.mxu0 0.0
  %1948 = vmatpush1.msra.mxu0 0.0
  %1949 = vmatprep.subr.mxu0 0.0
  %1950 = vmatpush1.msra.mxu0 0.0
  %1951 = vmatprep.subr.mxu0 0.0
  %1952 = vmatpush1.msra.mxu0 0.0
  %1953 = vmatprep.subr.mxu0 0.0
  %1954 = vmatpush1.msra.mxu0 0.0
  %1955 = vmatprep.subr.mxu0 0.0
  %1956 = vmatpush1.msra.mxu0 0.0
  %1957 = vmatprep.subr.mxu0 0.0
  %1958 = vmatpush1.msra.mxu0 0.0
  %1959 = vmatprep.subr.mxu0 0.0
  %1960 = vmatpush1.msra.mxu0 0.0
  %1961 = vmatprep.subr.mxu0 0.0
  %1962 = vmatpush1.msra.mxu0 0.0
  %1963 = vmatprep.subr.mxu0 0.0
  %1964 = vmatpush1.msra.mxu0 0.0
  %1965 = vmatprep.subr.mxu0 0.0
  %1966 = vmatpush1.msra.mxu0 0.0
  %1967 = vmatprep.subr.mxu0 0.0
  %1968 = vmatpush1.msra.mxu0 0.0
  %1969 = vmatprep.subr.mxu0 0.0
  %1970 = vmatpush1.msra.mxu0 0.0
  %1971 = vmatprep.subr.mxu0 0.0
  %1972 = vmatpush1.msra.mxu0 0.0
  %1973 = vmatprep.subr.mxu0 0.0
  %1974 = vmatpush1.msra.mxu0 0.0
  %1975 = vmatprep.subr.mxu0 0.0
  %1976 = vmatpush1.msra.mxu0 0.0
  %1977 = vmatprep.subr.mxu0 0.0
  %1978 = vmatpush1.msra.mxu0 0.0
  %1979 = vmatprep.subr.mxu0 0.0
  %1980 = vmatpush1.msra.mxu0 0.0
  %1981 = vmatprep.subr.mxu0 0.0
  %1982 = vmatpush1.msra.mxu0 0.0
  %1983 = vmatprep.subr.mxu0 0.0
  %1984 = vmatpush1.msra.mxu0 0.0
  %1985 = vmatprep.subr.mxu0 0.0
  %1986 = vmatpush1.msra.mxu0 0.0
  %1987 = vmatprep.subr.mxu0 0.0
  %1988 = vmatpush1.msra.mxu0 0.0
  %1989 = vmatprep.subr.mxu0 0.0
  %1990 = vmatpush1.msra.mxu0 0.0
  %1991 = vmatprep.subr.mxu0 0.0
  %1992 = vmatpush1.msra.mxu0 0.0
  %1993 = vmatprep.subr.mxu0 0.0
  %1994 = vmatpush1.msra.mxu0 0.0
  %1995 = vmatprep.subr.mxu0 0.0
  %1996 = vmatpush1.msra.mxu0 0.0
  %1997 = vmatprep.mubr.f32.mxu0 0.0
  %1998 = vmatmul.mubr.f32.gmra.mrb[0].mxu0 %v1147
  %v1999 = vpop.f32.mrb[0].mxu0
  %v2000 = vadd.f32 %v1930, %v1999
  %v2001 = vpop.f32.mrb[0].mxu0
  %2002 = vdwg.mxu0
  %v2003 = vld [vmem:[%s8] sm:$0x1]
  %v2005 = vlaneseq
  %v2006 = vshrl.u32 %v2005, 7
  %v2007 = vsub.s32 0, %v2006
  %v2008 = vrot.slane %v2003, %v2007
  %v2010 = vadd.f32 %v2000, %v2008
  %vm2011 = vcmask 31744
  %2012 = vst.msk [vmem:[%s9] sm:$0xff] %vm2011, %v2010
  // Predicated region
  $region38: #{net_forward.1} parent=0 // pred_check
    _
  $region39: #{net_forward.1} parent=0 // pred_check_branch
    %2014 = sbr.rel (0) target = $region41
  $region40: #{net_forward.1} parent=0 // pred_region
    _
  $region41: #{net_forward.1} parent=0 // pred_fallthru
    _
  // Predicated region
  $region42: #{net_forward.1} parent=0 // pred_check
    _
  $region43: #{net_forward.1} parent=0 // pred_check_branch
    %2016 = sbr.rel (0) target = $region45
  $region44: #{net_forward.1} parent=0 // pred_region
    _
  $region45: #{net_forward.1} parent=0 // pred_fallthru
    _

</llo_original>
